<compile_context>
chip_gen: v6e
topology: v6e:2x2x1
jax: 0.10.0
libtpu: 0.0.40
codegen_flags: <defaults>
</compile_context>

<pallas_src>
import numpy as np
import jax
import jax.numpy as jnp
from jax.experimental import pallas as pl
from jax.experimental.pallas import tpu as pltpu

# ---------------- small, self-consistent configuration ----------------------
N_BATCH = 2
N_WIN = 16                     # T
N_IN = 8                       # input (audio) channels
N_LC_IN = 4                    # local-conditioning input channels
N_LC_OUT = 8
LC_UPSAMPLE_STRIDES = (2, 2)
LC_UPSAMPLE_KERNS = (4, 6)     # chosen so the upsampled lc length == N_WIN
N_RES = 8
N_DIL = 8
N_SKP = 8
N_POST = 16
N_QUANT = 16
N_BLOCKS = 2
N_BLOCK_LAYERS = 2
JITTER_PROB = 0.1
N_SPEAKERS = 8
N_GLOBAL_EMBED = 8

N_COND = N_LC_OUT + N_GLOBAL_EMBED
N_LAYERS = N_BLOCKS * N_BLOCK_LAYERS
LC_STRIDE = int(np.prod(LC_UPSAMPLE_STRIDES))
N_LC_WIN = N_WIN // LC_STRIDE  # original uses float division; int here

CDT = jnp.bfloat16             # MXU operand dtype; accumulation / carry is f32
HEAD_COLS = max(N_RES, N_POST, N_QUANT)


# ============================ Pallas kernel ==================================
def wavenet_core_kernel(xc_ref, mask_ref, w_in_ref, w_cond_ref, b_all_ref,
                        w_out_ref, head_w_ref, head_b_ref, out_ref):
    """Fully fused WaveNet core, single invocation, batch folded into rows.

    xc:     (B*T, N_IN + N_COND)         bf16  [x | cond]
    mask:   (B*T, 2*N_DIL)               f32   0 at batch-start rows, else 1
    w_in:   (L, N_RES, 4*N_DIL)          bf16  [ws_prev|wg_prev|ws_cur|wg_cur]
    w_cond: (N_COND, L*2*N_DIL)          bf16  per-layer [wps|wpg], stacked
    b_all:  (1, L*2*N_DIL)               f32   per-layer [bs|bg], stacked
    w_out:  (L, N_DIL, N_RES + N_SKP)    bf16  [wres | wskp]
    head_w: (N_IN + N_SKP + N_POST, 16)  bf16  [base_w ; p1w ; p2w] (col-padded)
    head_b: (4, 16)                      f32   [base_b ; p1b ; p2b ; q_inner]
    out:    (B, T+4, N_QUANT)            f32   log-softmax over TIME
    """
    BT = xc_ref.shape[0]
    B, T_out, _ = out_ref.shape
    T = T_out - 4
    L = w_in_ref.shape[0]
    R, D, S = N_RES, N_DIL, N_SKP

    xc = xc_ref[...]                          # (BT, I+C) bf16
    x_c = xc[:, :N_IN]
    cond_c = xc[:, N_IN:]
    mask = mask_ref[...]                      # (BT, 2D) f32

    hw = head_w_ref[...]                      # bf16
    hb = head_b_ref[...]                      # f32
    base_w = hw[:N_IN, :R]
    p1w = hw[N_IN:N_IN + S, :N_POST]
    p2w = hw[N_IN + S:, :N_QUANT]
    base_b = hb[0:1, :R]
    p1b = hb[1:2, :N_POST]
    p2b = hb[2:3, :N_QUANT]
    q_inner = hb[3:4, :N_QUANT]               # relu(p1b)@p2w + p2b (precomputed)

    # Hoisted conditioning projection + biases: cond is layer-invariant, so ONE
    # (BT, C) @ (C, L*2D) matmul replaces L narrow matmuls + L bias adds.
    cond_fg = jnp.dot(cond_c, w_cond_ref[...],
                      preferred_element_type=jnp.float32) + b_all_ref[...]

    # base_layer: 1x1 conv == matmul; f32 residual carry.
    sig = jnp.dot(x_c, base_w, preferred_element_type=jnp.float32) + base_b
    skp = jnp.zeros((BT, S), jnp.float32)

    # TODO(synk): switch to lax.fori_loop(..., unroll=True) over the stacked
    # weight refs if the layer count grows beyond a handful (here L=4).
    for l in range(L):
        # One (BT,R)@(R,4D) matmul -> [prev_filt|prev_gate|cur_filt|cur_gate].
        u = jnp.dot(sig.astype(CDT), w_in_ref[l],
                    preferred_element_type=jnp.float32)            # (BT, 4D)
        # Causal shift commuted past W_prev: roll the projected "prev" columns
        # by one row and zero the batch-start rows (mask).  No MXU, no O(BT^2)
        # shift matrix, no per-layer lane concat.
        # TODO(synk): pltpu.roll (single XLU sublane rotate) once the lane
        # width is 128-aligned at real channel counts.
        prev_fg = jnp.roll(u[:, :2 * D], 1, axis=0) * mask          # (BT, 2D)
        off = 2 * D * l
        fg = prev_fg + u[:, 2 * D:] + cond_fg[:, off:off + 2 * D]
        z = jnp.tanh(fg[:, :D]) * jax.nn.sigmoid(fg[:, D:])         # f32 (EUP)
        # Fused residual+skip projection.
        rs = jnp.dot(z.astype(CDT), w_out_ref[l],
                     preferred_element_type=jnp.float32)            # (BT, R+S)
        sig = sig + rs[:, :R]
        skp = skp + rs[:, R:]

    # post1/post2 are Conv1d(k=1, stride=1, padding=1): the padded timesteps
    # are pure bias functions -> handled analytically; main path keeps M=B*T.
    h = jnp.maximum(skp, 0.0)                                       # ReLU (f32)
    p1 = jnp.dot(h.astype(CDT), p1w,
                 preferred_element_type=jnp.float32) + p1b          # (BT, P)
    h2 = jnp.maximum(p1, 0.0)
    q = jnp.dot(h2.astype(CDT), p2w,
                preferred_element_type=jnp.float32) + p2b           # (BT, Q)
    q_outer = p2b                                                   # pad rows 0 / T+3
    #   q_inner (pad rows 1 / T+2) was precomputed exactly in f32.

    # nn.LogSoftmax(2) on (B, Q, T') == normalize over TIME per batch, and the
    # 4 bias-only padded timesteps take part in the normalization (PyTorch
    # quirk reproduced).  Output assembled with direct region writes instead
    # of a sublane concat of 1-row pieces with the T-row slab.
    for b in range(B):
        seg = q[b * T:(b + 1) * T, :]                               # (T, Q)
        m = jnp.maximum(jnp.max(seg, axis=0, keepdims=True),
                        jnp.maximum(q_outer, q_inner))
        ssum = (jnp.sum(jnp.exp(seg - m), axis=0, keepdims=True)
                + 2.0 * jnp.exp(q_outer - m)
                + 2.0 * jnp.exp(q_inner - m))
        lse = jnp.log(ssum) + m                                     # (1, Q)
        out_ref[b, 0:1, :] = q_outer - lse
        out_ref[b, 1:2, :] = q_inner - lse
        out_ref[b, 2:2 + T, :] = seg - lse
        out_ref[b, 2 + T:3 + T, :] = q_inner - lse
        out_ref[b, 3 + T:4 + T, :] = q_outer - lse


# ============================ Pallas wrapper =================================
def wavenet_core_pallas(x_tc, cond_tc, packed):
    """x_tc: (B, T, N_IN), cond_tc: (B, T, N_COND) -> (B, T+4, N_QUANT)."""
    B, T, _ = x_tc.shape
    xc = jnp.concatenate([x_tc, cond_tc], axis=-1)
    xc = xc.reshape(B * T, N_IN + N_COND).astype(CDT)
    # Batch-start mask (rows that must see a zero conv_state after the causal
    # shift), passed as a tiny operand instead of rebuilding iotas in-kernel.
    mask = (jnp.arange(B * T) % T != 0).astype(jnp.float32)[:, None]
    mask = jnp.broadcast_to(mask, (B * T, 2 * N_DIL))
    vmem = pl.BlockSpec(memory_space=pltpu.MemorySpace.VMEM)
    # Single invocation, no grid: whole problem (a few KB) lives in VMEM; grid
    # steps / per-operand DMAs would cost more than the compute.
    # TODO(synk): on v7x add grid=(B,) with dimension_semantics=("parallel",)
    # to engage the second TensorCore; keep the folded call on v5e/v6e.
    return pl.pallas_call(
        wavenet_core_kernel,
        out_shape=jax.ShapeDtypeStruct((B, T + 4, N_QUANT), jnp.float32),
        in_specs=[vmem] * 8,
        out_specs=vmem,
    )(xc, mask, packed["w_in"], packed["w_cond"], packed["b_all"],
      packed["w_out"], packed["head_w"], packed["head_b"])


# ============================ plain-JAX glue =================================
def make_jitter_index(n_batch, n_win, replace_prob, seed=0):
    """Deterministic replica of Jitter.__init__'s 2nd-order Markov sampling."""
    # TODO(synk): host-side numpy (mirrors the PyTorch __init__-time state).
    rng = np.random.default_rng(seed)
    p, s = replace_prob, 1.0 - 2.0 * replace_prob
    tmp = np.tile(np.array([p, s, p], dtype=np.float64), (3, 3, 1))
    tmp[2, 1] = np.array([0.0, s / (p + s), p / (p + s)])
    mindex = np.empty((n_batch, n_win + 2), dtype=np.int64)
    mindex[:, 0:2] = 1
    for b in range(n_batch):
        for t in range(2, n_win + 1):
            probs = tmp[mindex[b, t - 1], mindex[b, t - 2]]
            mindex[b, t] = rng.choice(3, p=probs)
        mindex[b, n_win + 1] = 1
    mindex = mindex + (np.arange(n_win + 2, dtype=np.int64)[None, :] - 1)
    return jnp.asarray(mindex, dtype=jnp.int32)


def jitter_apply(x, mindex):
    """x: (B, C, T_m), mindex: (B, T_m) -> (B, C, T_m - 2)."""
    y = jnp.take_along_axis(x, mindex[:, None, :], axis=2)
    return y[:, :, 1:-1]


def conv1d_valid(x, w, b):
    """nn.Conv1d (valid).  x: (B, Cin, T); w: (Cout, Cin, K)."""
    y = jax.lax.conv_general_dilated(
        x, w, window_strides=(1,), padding="VALID",
        dimension_numbers=("NCH", "OIH", "NCH"))
    return y + b[None, :, None]


def conv_transpose1d(x, w, b, stride):
    """nn.ConvTranspose1d (no padding) as zero-insertion + dense conv.
    x: (B, Cin, T); w: (Cin, Cout, K)."""
    K = w.shape[2]
    w_oik = jnp.flip(jnp.transpose(w, (1, 0, 2)), axis=2)     # (Cout, Cin, K)
    y = jax.lax.conv_general_dilated(
        x, w_oik, window_strides=(1,), padding=[(K - 1, K - 1)],
        lhs_dilation=(stride,), dimension_numbers=("NCH", "OIH", "NCH"))
    return y + b[None, :, None]


def prepare_inputs(params, x, lc, voice_ids, mindex):
    """Jitter -> lc_conv -> upsample -> Conditioning; returns (T, C) layouts."""
    lc_j = jitter_apply(lc, mindex)                           # (B, Lc, n_lc_win)
    h = conv1d_valid(lc_j, params["lc_conv_w"], params["lc_conv_b"])
    for (w, b), s in zip(params["upsample"], LC_UPSAMPLE_STRIDES):
        h = conv_transpose1d(h, w, b, s)                      # (B, n_lc_out, T)
    assert h.shape[2] == x.shape[2]
    # Conditioning: one_hot(ids) @ W_emb.T + b == embedding lookup.
    gc = params["emb_w"].T[voice_ids] + params["emb_b"]       # (B, T, G)
    # TODO(synk): original cats (B,C,T) lc with (B,T,G) gc on dim 2 (shape
    # error); intended channel-concat producing (B, T, n_cond) is used.
    cond_tc = jnp.concatenate([jnp.transpose(h, (0, 2, 1)), gc], axis=-1)
    x_tc = jnp.transpose(x, (0, 2, 1))                        # (B, T, N_IN)
    return x_tc.astype(jnp.float32), cond_tc.astype(jnp.float32)


@jax.jit
def wavenet_forward(params, packed, x, lc, voice_ids, mindex):
    """x: (B, N_IN, T) NCW -> logits (B, N_QUANT, T+4) (PyTorch layout)."""
    x_tc, cond_tc = prepare_inputs(params, x, lc, voice_ids, mindex)
    core = wavenet_core_pallas(x_tc, cond_tc, packed)         # (B, T+4, Q)
    return jnp.transpose(core, (0, 2, 1))


# ======================= pure-JAX reference (f32) ============================
def wavenet_core_reference(p, x_tc, cond_tc):
    """Straightforward jnp mirror of the intended core semantics (f32)."""
    sig = x_tc @ p["base_w"] + p["base_b"]
    skp = jnp.zeros(sig.shape[:-1] + (N_SKP,), jnp.float32)
    for l in range(N_LAYERS):
        prev = jnp.concatenate([jnp.zeros_like(sig[:, :1]), sig[:, :-1]], axis=1)
        filt = (prev @ p["ws"][l, 0] + sig @ p["ws"][l, 1]
                + cond_tc @ p["wps"][l] + p["bs"][l])
        gate = (prev @ p["wg"][l, 0] + sig @ p["wg"][l, 1]
                + cond_tc @ p["wpg"][l] + p["bg"][l])
        z = jnp.tanh(filt) * jax.nn.sigmoid(gate)
        sig = sig + z @ p["wres"][l]
        skp = skp + z @ p["wskp"][l]
    h = jax.nn.relu(skp)
    p1 = jnp.pad(h, ((0, 0), (1, 1), (0, 0))) @ p["p1w"] + p["p1b"]
    h2 = jax.nn.relu(p1)
    q = jnp.pad(h2, ((0, 0), (1, 1), (0, 0))) @ p["p2w"] + p["p2b"]
    return jax.nn.log_softmax(q, axis=1)                      # over TIME


# ============================ deterministic init =============================
def init_params(key):
    cnt = [0]

    def rnd(shape, scale=0.1):
        cnt[0] += 1
        return scale * jax.random.normal(
            jax.random.fold_in(key, cnt[0]), shape, jnp.float32)

    p = {}
    # Conditioning.speaker_embedding = Linear(n_speakers, n_global_embed)
    p["emb_w"] = rnd((N_GLOBAL_EMBED, N_SPEAKERS))
    p["emb_b"] = rnd((N_GLOBAL_EMBED,))
    # lc_conv = Conv1d(N_LC_IN, N_LC_OUT, 3)
    p["lc_conv_w"] = rnd((N_LC_OUT, N_LC_IN, 3))
    p["lc_conv_b"] = rnd((N_LC_OUT,))
    # lc_upsample = Sequential(ConvTranspose1d(N_LC_OUT, N_LC_OUT, k, s))
    p["upsample"] = [(rnd((N_LC_OUT, N_LC_OUT, k)), rnd((N_LC_OUT,)))
                     for k in LC_UPSAMPLE_KERNS]
    # base_layer = Conv1d(N_IN, N_RES, 1)
    p["base_w"] = rnd((N_IN, N_RES))
    p["base_b"] = rnd((1, N_RES))
    # Gated residual layers; bias=dil=bl**2 quirk -> block-layer 0 has no bias
    # (modeled as an explicit zero bias, preserved through packing).
    ws, wg, bs, bg, wps, wpg, wres, wskp = [], [], [], [], [], [], [], []
    for li in range(N_LAYERS):
        bl = li % N_BLOCK_LAYERS
        has_bias = (bl ** 2) != 0
        ws.append(rnd((2, N_RES, N_DIL)))
        wg.append(rnd((2, N_RES, N_DIL)))
        bs.append(rnd((1, N_DIL)) if has_bias
                  else jnp.zeros((1, N_DIL), jnp.float32))
        bg.append(rnd((1, N_DIL)) if has_bias
                  else jnp.zeros((1, N_DIL), jnp.float32))
        wps.append(rnd((N_COND, N_DIL)))
        wpg.append(rnd((N_COND, N_DIL)))
        wres.append(rnd((N_DIL, N_RES)))
        wskp.append(rnd((N_DIL, N_SKP)))
    p["ws"] = jnp.stack(ws); p["wg"] = jnp.stack(wg)
    p["bs"] = jnp.stack(bs); p["bg"] = jnp.stack(bg)
    p["wps"] = jnp.stack(wps); p["wpg"] = jnp.stack(wpg)
    p["wres"] = jnp.stack(wres); p["wskp"] = jnp.stack(wskp)
    # post1 = Conv1d(N_SKP, N_POST, 1, 1, padding=1); post2 likewise
    p["p1w"] = rnd((N_SKP, N_POST)); p["p1b"] = rnd((1, N_POST))
    p["p2w"] = rnd((N_POST, N_QUANT)); p["p2b"] = rnd((1, N_QUANT))
    return p


def pack_params(p):
    """Pack per-layer / head weights into the few fused kernel operands."""
    w_in, w_cond_cols, b_cols = [], [], []
    for l in range(N_LAYERS):
        prev_part = jnp.concatenate([p["ws"][l, 0], p["wg"][l, 0]], axis=1)
        cur_part = jnp.concatenate([p["ws"][l, 1], p["wg"][l, 1]], axis=1)
        w_in.append(jnp.concatenate([prev_part, cur_part], axis=1))  # (R, 4D)
        w_cond_cols.append(jnp.concatenate([p["wps"][l], p["wpg"][l]], axis=1))
        b_cols.append(jnp.concatenate([p["bs"][l], p["bg"][l]], axis=1))
    w_in = jnp.stack(w_in).astype(CDT)                        # (L, R, 4D)
    w_cond = jnp.concatenate(w_cond_cols, axis=1).astype(CDT)  # (C, L*2D)
    b_all = jnp.concatenate(b_cols, axis=1).astype(jnp.float32)  # (1, L*2D)
    w_out = jnp.concatenate([p["wres"], p["wskp"]], axis=2).astype(CDT)

    def padc(a, cols):
        return jnp.pad(a, ((0, 0), (0, HEAD_COLS - cols)))

    head_w = jnp.concatenate(
        [padc(p["base_w"], N_RES), padc(p["p1w"], N_POST),
         padc(p["p2w"], N_QUANT)], axis=0).astype(CDT)        # (I+S+P, 16)
    # Padded timestep of post2 == relu(p1b) @ p2w + p2b, a pure "derived
    # parameter"; computed exactly in f32 here instead of in the kernel.
    q_inner = jnp.maximum(p["p1b"], 0.0) @ p["p2w"] + p["p2b"]
    head_b = jnp.concatenate(
        [padc(p["base_b"], N_RES), padc(p["p1b"], N_POST),
         padc(p["p2b"], N_QUANT), padc(q_inner, N_QUANT)],
        axis=0).astype(jnp.float32)                           # (4, 16)
    return {"w_in": w_in, "w_cond": w_cond, "b_all": b_all, "w_out": w_out,
            "head_w": head_w, "head_b": head_b}


# ================================== main =====================================
if __name__ == "__main__":
    root = jax.random.PRNGKey(0)
    params = init_params(jax.random.fold_in(root, 1))
    packed = pack_params(params)

    kx, klc, kid = jax.random.split(jax.random.fold_in(root, 2), 3)
    x = jax.random.normal(kx, (N_BATCH, N_IN, N_WIN), jnp.float32)
    lc = jax.random.normal(klc, (N_BATCH, N_LC_IN, N_LC_WIN + 2), jnp.float32)
    voice_ids = jax.random.randint(kid, (N_BATCH, N_WIN), 0, N_SPEAKERS)
    mindex = make_jitter_index(N_BATCH, N_LC_WIN, JITTER_PROB, seed=0)

    logits = wavenet_forward(params, packed, x, lc, voice_ids, mindex)
    logits = jax.block_until_ready(logits)
    assert logits.shape == (N_BATCH, N_QUANT, N_WIN + 4), logits.shape
    assert bool(jnp.all(jnp.isfinite(logits)))

    # Correctness: fused Pallas core vs. pure-JAX f32 reference (bf16 MXU
    # operands with f32 accumulation -> loose absolute tolerance).
    x_tc, cond_tc = prepare_inputs(params, x, lc, voice_ids, mindex)
    core = jax.block_until_ready(
        jax.jit(wavenet_core_pallas)(x_tc, cond_tc, packed))
    ref = wavenet_core_reference(params, x_tc, cond_tc)
    err = float(jnp.max(jnp.abs(core - ref)))
    assert err < 5e-2, f"kernel vs reference max-abs-diff {err}"

    print("KERNEL_OK")
</pallas_src>

<mosaic_0001>
module attributes {stable_mosaic.version = 11 : i64} {
  func.func @wavenet_core_kernel(%arg0: memref<32x24xbf16, #tpu.memory_space<vmem>>, %arg1: memref<32x16xf32, #tpu.memory_space<vmem>>, %arg2: memref<4x8x32xbf16, #tpu.memory_space<vmem>>, %arg3: memref<16x64xbf16, #tpu.memory_space<vmem>>, %arg4: memref<1x64xf32, #tpu.memory_space<vmem>>, %arg5: memref<4x8x16xbf16, #tpu.memory_space<vmem>>, %arg6: memref<32x16xbf16, #tpu.memory_space<vmem>>, %arg7: memref<4x16xf32, #tpu.memory_space<vmem>>, %arg8: memref<2x20x16xf32, #tpu.memory_space<vmem>>) attributes {dimension_semantics = [], scalar_prefetch = 0 : i64, scratch_operands = 0 : i64, tpu.core_type = #tpu.core_type<tc>} {
    %c0 = arith.constant 0 : index
    %c0_0 = arith.constant 0 : index
    %0 = vector.load %arg0[%c0, %c0_0] : memref<32x24xbf16, #tpu.memory_space<vmem>>, vector<32x24xbf16>
    %1 = vector.extract_strided_slice %0 {offsets = [0, 0], sizes = [32, 8], strides = [1, 1]} : vector<32x24xbf16> to vector<32x8xbf16>
    %2 = vector.extract_strided_slice %0 {offsets = [0, 8], sizes = [32, 16], strides = [1, 1]} : vector<32x24xbf16> to vector<32x16xbf16>
    %c0_1 = arith.constant 0 : index
    %c0_2 = arith.constant 0 : index
    %3 = vector.load %arg1[%c0_1, %c0_2] : memref<32x16xf32, #tpu.memory_space<vmem>>, vector<32x16xf32>
    %c0_3 = arith.constant 0 : index
    %c0_4 = arith.constant 0 : index
    %4 = vector.load %arg6[%c0_3, %c0_4] : memref<32x16xbf16, #tpu.memory_space<vmem>>, vector<32x16xbf16>
    %c0_5 = arith.constant 0 : index
    %c0_6 = arith.constant 0 : index
    %5 = vector.load %arg7[%c0_5, %c0_6] : memref<4x16xf32, #tpu.memory_space<vmem>>, vector<4x16xf32>
    %6 = vector.extract_strided_slice %4 {offsets = [0, 0], sizes = [8, 8], strides = [1, 1]} : vector<32x16xbf16> to vector<8x8xbf16>
    %7 = vector.extract_strided_slice %4 {offsets = [8, 0], sizes = [8, 16], strides = [1, 1]} : vector<32x16xbf16> to vector<8x16xbf16>
    %8 = vector.extract_strided_slice %4 {offsets = [16, 0], sizes = [16, 16], strides = [1, 1]} : vector<32x16xbf16> to vector<16x16xbf16>
    %9 = vector.extract_strided_slice %5 {offsets = [0, 0], sizes = [1, 8], strides = [1, 1]} : vector<4x16xf32> to vector<1x8xf32>
    %10 = vector.extract_strided_slice %5 {offsets = [1, 0], sizes = [1, 16], strides = [1, 1]} : vector<4x16xf32> to vector<1x16xf32>
    %11 = vector.extract_strided_slice %5 {offsets = [2, 0], sizes = [1, 16], strides = [1, 1]} : vector<4x16xf32> to vector<1x16xf32>
    %12 = vector.extract_strided_slice %5 {offsets = [3, 0], sizes = [1, 16], strides = [1, 1]} : vector<4x16xf32> to vector<1x16xf32>
    %c0_7 = arith.constant 0 : index
    %c0_8 = arith.constant 0 : index
    %13 = vector.load %arg3[%c0_7, %c0_8] : memref<16x64xbf16, #tpu.memory_space<vmem>>, vector<16x64xbf16>
    %cst = arith.constant dense<0.000000e+00> : vector<32x64xf32>
    %14 = tpu.matmul %2, %13, %cst {dimension_numbers = #tpu.dot_dimension_numbers<[1], [0], [0], [1], [0, 0, 1, 1], [], []>} : vector<32x16xbf16>, vector<16x64xbf16>, vector<32x64xf32> -> vector<32x64xf32>
    %c0_9 = arith.constant 0 : index
    %c0_10 = arith.constant 0 : index
    %15 = vector.load %arg4[%c0_9, %c0_10] : memref<1x64xf32, #tpu.memory_space<vmem>>, vector<1x64xf32>
    %16 = vector.broadcast %15 : vector<1x64xf32> to vector<32x64xf32>
    %17 = arith.addf %14, %16 : vector<32x64xf32>
    %cst_11 = arith.constant dense<0.000000e+00> : vector<32x8xf32>
    %18 = tpu.matmul %1, %6, %cst_11 {dimension_numbers = #tpu.dot_dimension_numbers<[1], [0], [0], [1], [0, 0, 1, 1], [], []>} : vector<32x8xbf16>, vector<8x8xbf16>, vector<32x8xf32> -> vector<32x8xf32>
    %19 = vector.broadcast %9 : vector<1x8xf32> to vector<32x8xf32>
    %20 = arith.addf %18, %19 : vector<32x8xf32>
    %cst_12 = arith.constant 0.000000e+00 : f32
    %21 = vector.broadcast %cst_12 : f32 to vector<32x8xf32>
    %22 = arith.truncf %20 : vector<32x8xf32> to vector<32x8xbf16>
    %c0_13 = arith.constant 0 : index
    %c0_14 = arith.constant 0 : index
    %c0_15 = arith.constant 0 : index
    %23 = vector.load %arg2[%c0_13, %c0_14, %c0_15] : memref<4x8x32xbf16, #tpu.memory_space<vmem>>, vector<1x8x32xbf16>
    %24 = vector.shape_cast %23 : vector<1x8x32xbf16> to vector<8x32xbf16>
    %cst_16 = arith.constant dense<0.000000e+00> : vector<32x32xf32>
    %25 = tpu.matmul %22, %24, %cst_16 {dimension_numbers = #tpu.dot_dimension_numbers<[1], [0], [0], [1], [0, 0, 1, 1], [], []>} : vector<32x8xbf16>, vector<8x32xbf16>, vector<32x32xf32> -> vector<32x32xf32>
    %26 = vector.extract_strided_slice %25 {offsets = [0, 0], sizes = [32, 16], strides = [1, 1]} : vector<32x32xf32> to vector<32x16xf32>
    %27 = vector.extract_strided_slice %26 {offsets = [31, 0], sizes = [1, 16], strides = [1, 1]} : vector<32x16xf32> to vector<1x16xf32>
    %28 = vector.extract_strided_slice %26 {offsets = [0, 0], sizes = [31, 16], strides = [1, 1]} : vector<32x16xf32> to vector<31x16xf32>
    %29 = tpu.concatenate %27, %28 in 0 : vector<1x16xf32>, vector<31x16xf32> -> vector<32x16xf32>
    %30 = arith.mulf %29, %3 : vector<32x16xf32>
    %31 = vector.extract_strided_slice %25 {offsets = [0, 16], sizes = [32, 16], strides = [1, 1]} : vector<32x32xf32> to vector<32x16xf32>
    %32 = arith.addf %30, %31 : vector<32x16xf32>
    %33 = vector.extract_strided_slice %17 {offsets = [0, 0], sizes = [32, 16], strides = [1, 1]} : vector<32x64xf32> to vector<32x16xf32>
    %34 = arith.addf %32, %33 : vector<32x16xf32>
    %35 = vector.extract_strided_slice %34 {offsets = [0, 0], sizes = [32, 8], strides = [1, 1]} : vector<32x16xf32> to vector<32x8xf32>
    %36 = math.tanh %35 : vector<32x8xf32>
    %37 = vector.extract_strided_slice %34 {offsets = [0, 8], sizes = [32, 8], strides = [1, 1]} : vector<32x16xf32> to vector<32x8xf32>
    %38 = arith.negf %37 : vector<32x8xf32>
    %39 = math.exp %38 : vector<32x8xf32>
    %cst_17 = arith.constant 1.000000e+00 : f32
    %40 = vector.broadcast %cst_17 : f32 to vector<32x8xf32>
    %41 = arith.addf %40, %39 : vector<32x8xf32>
    %42 = arith.divf %40, %41 : vector<32x8xf32>
    %43 = arith.mulf %36, %42 : vector<32x8xf32>
    %44 = arith.truncf %43 : vector<32x8xf32> to vector<32x8xbf16>
    %c0_18 = arith.constant 0 : index
    %c0_19 = arith.constant 0 : index
    %c0_20 = arith.constant 0 : index
    %45 = vector.load %arg5[%c0_18, %c0_19, %c0_20] : memref<4x8x16xbf16, #tpu.memory_space<vmem>>, vector<1x8x16xbf16>
    %46 = vector.shape_cast %45 : vector<1x8x16xbf16> to vector<8x16xbf16>
    %cst_21 = arith.constant dense<0.000000e+00> : vector<32x16xf32>
    %47 = tpu.matmul %44, %46, %cst_21 {dimension_numbers = #tpu.dot_dimension_numbers<[1], [0], [0], [1], [0, 0, 1, 1], [], []>} : vector<32x8xbf16>, vector<8x16xbf16>, vector<32x16xf32> -> vector<32x16xf32>
    %48 = vector.extract_strided_slice %47 {offsets = [0, 0], sizes = [32, 8], strides = [1, 1]} : vector<32x16xf32> to vector<32x8xf32>
    %49 = arith.addf %20, %48 : vector<32x8xf32>
    %50 = vector.extract_strided_slice %47 {offsets = [0, 8], sizes = [32, 8], strides = [1, 1]} : vector<32x16xf32> to vector<32x8xf32>
    %51 = arith.addf %21, %50 : vector<32x8xf32>
    %52 = arith.truncf %49 : vector<32x8xf32> to vector<32x8xbf16>
    %c1 = arith.constant 1 : index
    %c0_22 = arith.constant 0 : index
    %c0_23 = arith.constant 0 : index
    %53 = vector.load %arg2[%c1, %c0_22, %c0_23] : memref<4x8x32xbf16, #tpu.memory_space<vmem>>, vector<1x8x32xbf16>
    %54 = vector.shape_cast %53 : vector<1x8x32xbf16> to vector<8x32xbf16>
    %cst_24 = arith.constant dense<0.000000e+00> : vector<32x32xf32>
    %55 = tpu.matmul %52, %54, %cst_24 {dimension_numbers = #tpu.dot_dimension_numbers<[1], [0], [0], [1], [0, 0, 1, 1], [], []>} : vector<32x8xbf16>, vector<8x32xbf16>, vector<32x32xf32> -> vector<32x32xf32>
    %56 = vector.extract_strided_slice %55 {offsets = [0, 0], sizes = [32, 16], strides = [1, 1]} : vector<32x32xf32> to vector<32x16xf32>
    %57 = vector.extract_strided_slice %56 {offsets = [31, 0], sizes = [1, 16], strides = [1, 1]} : vector<32x16xf32> to vector<1x16xf32>
    %58 = vector.extract_strided_slice %56 {offsets = [0, 0], sizes = [31, 16], strides = [1, 1]} : vector<32x16xf32> to vector<31x16xf32>
    %59 = tpu.concatenate %57, %58 in 0 : vector<1x16xf32>, vector<31x16xf32> -> vector<32x16xf32>
    %60 = arith.mulf %59, %3 : vector<32x16xf32>
    %61 = vector.extract_strided_slice %55 {offsets = [0, 16], sizes = [32, 16], strides = [1, 1]} : vector<32x32xf32> to vector<32x16xf32>
    %62 = arith.addf %60, %61 : vector<32x16xf32>
    %63 = vector.extract_strided_slice %17 {offsets = [0, 16], sizes = [32, 16], strides = [1, 1]} : vector<32x64xf32> to vector<32x16xf32>
    %64 = arith.addf %62, %63 : vector<32x16xf32>
    %65 = vector.extract_strided_slice %64 {offsets = [0, 0], sizes = [32, 8], strides = [1, 1]} : vector<32x16xf32> to vector<32x8xf32>
    %66 = math.tanh %65 : vector<32x8xf32>
    %67 = vector.extract_strided_slice %64 {offsets = [0, 8], sizes = [32, 8], strides = [1, 1]} : vector<32x16xf32> to vector<32x8xf32>
    %68 = arith.negf %67 : vector<32x8xf32>
    %69 = math.exp %68 : vector<32x8xf32>
    %cst_25 = arith.constant 1.000000e+00 : f32
    %70 = vector.broadcast %cst_25 : f32 to vector<32x8xf32>
    %71 = arith.addf %70, %69 : vector<32x8xf32>
    %72 = arith.divf %70, %71 : vector<32x8xf32>
    %73 = arith.mulf %66, %72 : vector<32x8xf32>
    %74 = arith.truncf %73 : vector<32x8xf32> to vector<32x8xbf16>
    %c1_26 = arith.constant 1 : index
    %c0_27 = arith.constant 0 : index
    %c0_28 = arith.constant 0 : index
    %75 = vector.load %arg5[%c1_26, %c0_27, %c0_28] : memref<4x8x16xbf16, #tpu.memory_space<vmem>>, vector<1x8x16xbf16>
    %76 = vector.shape_cast %75 : vector<1x8x16xbf16> to vector<8x16xbf16>
    %cst_29 = arith.constant dense<0.000000e+00> : vector<32x16xf32>
    %77 = tpu.matmul %74, %76, %cst_29 {dimension_numbers = #tpu.dot_dimension_numbers<[1], [0], [0], [1], [0, 0, 1, 1], [], []>} : vector<32x8xbf16>, vector<8x16xbf16>, vector<32x16xf32> -> vector<32x16xf32>
    %78 = vector.extract_strided_slice %77 {offsets = [0, 0], sizes = [32, 8], strides = [1, 1]} : vector<32x16xf32> to vector<32x8xf32>
    %79 = arith.addf %49, %78 : vector<32x8xf32>
    %80 = vector.extract_strided_slice %77 {offsets = [0, 8], sizes = [32, 8], strides = [1, 1]} : vector<32x16xf32> to vector<32x8xf32>
    %81 = arith.addf %51, %80 : vector<32x8xf32>
    %82 = arith.truncf %79 : vector<32x8xf32> to vector<32x8xbf16>
    %c2 = arith.constant 2 : index
    %c0_30 = arith.constant 0 : index
    %c0_31 = arith.constant 0 : index
    %83 = vector.load %arg2[%c2, %c0_30, %c0_31] : memref<4x8x32xbf16, #tpu.memory_space<vmem>>, vector<1x8x32xbf16>
    %84 = vector.shape_cast %83 : vector<1x8x32xbf16> to vector<8x32xbf16>
    %cst_32 = arith.constant dense<0.000000e+00> : vector<32x32xf32>
    %85 = tpu.matmul %82, %84, %cst_32 {dimension_numbers = #tpu.dot_dimension_numbers<[1], [0], [0], [1], [0, 0, 1, 1], [], []>} : vector<32x8xbf16>, vector<8x32xbf16>, vector<32x32xf32> -> vector<32x32xf32>
    %86 = vector.extract_strided_slice %85 {offsets = [0, 0], sizes = [32, 16], strides = [1, 1]} : vector<32x32xf32> to vector<32x16xf32>
    %87 = vector.extract_strided_slice %86 {offsets = [31, 0], sizes = [1, 16], strides = [1, 1]} : vector<32x16xf32> to vector<1x16xf32>
    %88 = vector.extract_strided_slice %86 {offsets = [0, 0], sizes = [31, 16], strides = [1, 1]} : vector<32x16xf32> to vector<31x16xf32>
    %89 = tpu.concatenate %87, %88 in 0 : vector<1x16xf32>, vector<31x16xf32> -> vector<32x16xf32>
    %90 = arith.mulf %89, %3 : vector<32x16xf32>
    %91 = vector.extract_strided_slice %85 {offsets = [0, 16], sizes = [32, 16], strides = [1, 1]} : vector<32x32xf32> to vector<32x16xf32>
    %92 = arith.addf %90, %91 : vector<32x16xf32>
    %93 = vector.extract_strided_slice %17 {offsets = [0, 32], sizes = [32, 16], strides = [1, 1]} : vector<32x64xf32> to vector<32x16xf32>
    %94 = arith.addf %92, %93 : vector<32x16xf32>
    %95 = vector.extract_strided_slice %94 {offsets = [0, 0], sizes = [32, 8], strides = [1, 1]} : vector<32x16xf32> to vector<32x8xf32>
    %96 = math.tanh %95 : vector<32x8xf32>
    %97 = vector.extract_strided_slice %94 {offsets = [0, 8], sizes = [32, 8], strides = [1, 1]} : vector<32x16xf32> to vector<32x8xf32>
    %98 = arith.negf %97 : vector<32x8xf32>
    %99 = math.exp %98 : vector<32x8xf32>
    %cst_33 = arith.constant 1.000000e+00 : f32
    %100 = vector.broadcast %cst_33 : f32 to vector<32x8xf32>
    %101 = arith.addf %100, %99 : vector<32x8xf32>
    %102 = arith.divf %100, %101 : vector<32x8xf32>
    %103 = arith.mulf %96, %102 : vector<32x8xf32>
    %104 = arith.truncf %103 : vector<32x8xf32> to vector<32x8xbf16>
    %c2_34 = arith.constant 2 : index
    %c0_35 = arith.constant 0 : index
    %c0_36 = arith.constant 0 : index
    %105 = vector.load %arg5[%c2_34, %c0_35, %c0_36] : memref<4x8x16xbf16, #tpu.memory_space<vmem>>, vector<1x8x16xbf16>
    %106 = vector.shape_cast %105 : vector<1x8x16xbf16> to vector<8x16xbf16>
    %cst_37 = arith.constant dense<0.000000e+00> : vector<32x16xf32>
    %107 = tpu.matmul %104, %106, %cst_37 {dimension_numbers = #tpu.dot_dimension_numbers<[1], [0], [0], [1], [0, 0, 1, 1], [], []>} : vector<32x8xbf16>, vector<8x16xbf16>, vector<32x16xf32> -> vector<32x16xf32>
    %108 = vector.extract_strided_slice %107 {offsets = [0, 0], sizes = [32, 8], strides = [1, 1]} : vector<32x16xf32> to vector<32x8xf32>
    %109 = arith.addf %79, %108 : vector<32x8xf32>
    %110 = vector.extract_strided_slice %107 {offsets = [0, 8], sizes = [32, 8], strides = [1, 1]} : vector<32x16xf32> to vector<32x8xf32>
    %111 = arith.addf %81, %110 : vector<32x8xf32>
    %112 = arith.truncf %109 : vector<32x8xf32> to vector<32x8xbf16>
    %c3 = arith.constant 3 : index
    %c0_38 = arith.constant 0 : index
    %c0_39 = arith.constant 0 : index
    %113 = vector.load %arg2[%c3, %c0_38, %c0_39] : memref<4x8x32xbf16, #tpu.memory_space<vmem>>, vector<1x8x32xbf16>
    %114 = vector.shape_cast %113 : vector<1x8x32xbf16> to vector<8x32xbf16>
    %cst_40 = arith.constant dense<0.000000e+00> : vector<32x32xf32>
    %115 = tpu.matmul %112, %114, %cst_40 {dimension_numbers = #tpu.dot_dimension_numbers<[1], [0], [0], [1], [0, 0, 1, 1], [], []>} : vector<32x8xbf16>, vector<8x32xbf16>, vector<32x32xf32> -> vector<32x32xf32>
    %116 = vector.extract_strided_slice %115 {offsets = [0, 0], sizes = [32, 16], strides = [1, 1]} : vector<32x32xf32> to vector<32x16xf32>
    %117 = vector.extract_strided_slice %116 {offsets = [31, 0], sizes = [1, 16], strides = [1, 1]} : vector<32x16xf32> to vector<1x16xf32>
    %118 = vector.extract_strided_slice %116 {offsets = [0, 0], sizes = [31, 16], strides = [1, 1]} : vector<32x16xf32> to vector<31x16xf32>
    %119 = tpu.concatenate %117, %118 in 0 : vector<1x16xf32>, vector<31x16xf32> -> vector<32x16xf32>
    %120 = arith.mulf %119, %3 : vector<32x16xf32>
    %121 = vector.extract_strided_slice %115 {offsets = [0, 16], sizes = [32, 16], strides = [1, 1]} : vector<32x32xf32> to vector<32x16xf32>
    %122 = arith.addf %120, %121 : vector<32x16xf32>
    %123 = vector.extract_strided_slice %17 {offsets = [0, 48], sizes = [32, 16], strides = [1, 1]} : vector<32x64xf32> to vector<32x16xf32>
    %124 = arith.addf %122, %123 : vector<32x16xf32>
    %125 = vector.extract_strided_slice %124 {offsets = [0, 0], sizes = [32, 8], strides = [1, 1]} : vector<32x16xf32> to vector<32x8xf32>
    %126 = math.tanh %125 : vector<32x8xf32>
    %127 = vector.extract_strided_slice %124 {offsets = [0, 8], sizes = [32, 8], strides = [1, 1]} : vector<32x16xf32> to vector<32x8xf32>
    %128 = arith.negf %127 : vector<32x8xf32>
    %129 = math.exp %128 : vector<32x8xf32>
    %cst_41 = arith.constant 1.000000e+00 : f32
    %130 = vector.broadcast %cst_41 : f32 to vector<32x8xf32>
    %131 = arith.addf %130, %129 : vector<32x8xf32>
    %132 = arith.divf %130, %131 : vector<32x8xf32>
    %133 = arith.mulf %126, %132 : vector<32x8xf32>
    %134 = arith.truncf %133 : vector<32x8xf32> to vector<32x8xbf16>
    %c3_42 = arith.constant 3 : index
    %c0_43 = arith.constant 0 : index
    %c0_44 = arith.constant 0 : index
    %135 = vector.load %arg5[%c3_42, %c0_43, %c0_44] : memref<4x8x16xbf16, #tpu.memory_space<vmem>>, vector<1x8x16xbf16>
    %136 = vector.shape_cast %135 : vector<1x8x16xbf16> to vector<8x16xbf16>
    %cst_45 = arith.constant dense<0.000000e+00> : vector<32x16xf32>
    %137 = tpu.matmul %134, %136, %cst_45 {dimension_numbers = #tpu.dot_dimension_numbers<[1], [0], [0], [1], [0, 0, 1, 1], [], []>} : vector<32x8xbf16>, vector<8x16xbf16>, vector<32x16xf32> -> vector<32x16xf32>
    %138 = vector.extract_strided_slice %137 {offsets = [0, 8], sizes = [32, 8], strides = [1, 1]} : vector<32x16xf32> to vector<32x8xf32>
    %139 = arith.addf %111, %138 : vector<32x8xf32>
    %cst_46 = arith.constant 0.000000e+00 : f32
    %140 = vector.broadcast %cst_46 : f32 to vector<32x8xf32>
    %141 = arith.maximumf %139, %140 : vector<32x8xf32>
    %142 = arith.truncf %141 : vector<32x8xf32> to vector<32x8xbf16>
    %cst_47 = arith.constant dense<0.000000e+00> : vector<32x16xf32>
    %143 = tpu.matmul %142, %7, %cst_47 {dimension_numbers = #tpu.dot_dimension_numbers<[1], [0], [0], [1], [0, 0, 1, 1], [], []>} : vector<32x8xbf16>, vector<8x16xbf16>, vector<32x16xf32> -> vector<32x16xf32>
    %144 = vector.broadcast %10 : vector<1x16xf32> to vector<32x16xf32>
    %145 = arith.addf %143, %144 : vector<32x16xf32>
    %cst_48 = arith.constant 0.000000e+00 : f32
    %146 = vector.broadcast %cst_48 : f32 to vector<32x16xf32>
    %147 = arith.maximumf %145, %146 : vector<32x16xf32>
    %148 = arith.truncf %147 : vector<32x16xf32> to vector<32x16xbf16>
    %cst_49 = arith.constant dense<0.000000e+00> : vector<32x16xf32>
    %149 = tpu.matmul %148, %8, %cst_49 {dimension_numbers = #tpu.dot_dimension_numbers<[1], [0], [0], [1], [0, 0, 1, 1], [], []>} : vector<32x16xbf16>, vector<16x16xbf16>, vector<32x16xf32> -> vector<32x16xf32>
    %150 = vector.broadcast %11 : vector<1x16xf32> to vector<32x16xf32>
    %151 = arith.addf %149, %150 : vector<32x16xf32>
    %152 = vector.extract_strided_slice %151 {offsets = [0, 0], sizes = [16, 16], strides = [1, 1]} : vector<32x16xf32> to vector<16x16xf32>
    %cst_50 = arith.constant dense<0xFF800000> : vector<16xf32>
    %153 = vector.multi_reduction <maximumf>, %152, %cst_50 [0] : vector<16x16xf32> to vector<16xf32>
    %154 = vector.shape_cast %153 : vector<16xf32> to vector<1x16xf32>
    %155 = arith.maximumf %11, %12 : vector<1x16xf32>
    %156 = arith.maximumf %154, %155 : vector<1x16xf32>
    %157 = vector.broadcast %156 : vector<1x16xf32> to vector<16x16xf32>
    %158 = arith.subf %152, %157 : vector<16x16xf32>
    %159 = math.exp %158 : vector<16x16xf32>
    %cst_51 = arith.constant dense<0.000000e+00> : vector<16xf32>
    %160 = vector.multi_reduction <add>, %159, %cst_51 [0] : vector<16x16xf32> to vector<16xf32>
    %161 = vector.shape_cast %160 : vector<16xf32> to vector<1x16xf32>
    %162 = arith.subf %11, %156 : vector<1x16xf32>
    %163 = math.exp %162 : vector<1x16xf32>
    %cst_52 = arith.constant 2.000000e+00 : f32
    %164 = vector.broadcast %cst_52 : f32 to vector<1x16xf32>
    %165 = arith.mulf %164, %163 : vector<1x16xf32>
    %166 = arith.addf %161, %165 : vector<1x16xf32>
    %167 = arith.subf %12, %156 : vector<1x16xf32>
    %168 = math.exp %167 : vector<1x16xf32>
    %cst_53 = arith.constant 2.000000e+00 : f32
    %169 = vector.broadcast %cst_53 : f32 to vector<1x16xf32>
    %170 = arith.mulf %169, %168 : vector<1x16xf32>
    %171 = arith.addf %166, %170 : vector<1x16xf32>
    %172 = math.log %171 : vector<1x16xf32>
    %173 = arith.addf %172, %156 : vector<1x16xf32>
    %174 = arith.subf %11, %173 : vector<1x16xf32>
    %c0_54 = arith.constant 0 : index
    %c0_55 = arith.constant 0 : index
    %c0_56 = arith.constant 0 : index
    %175 = vector.load %arg8[%c0_54, %c0_55, %c0_56] : memref<2x20x16xf32, #tpu.memory_space<vmem>>, vector<1x1x16xf32>
    %176 = vector.shape_cast %175 : vector<1x1x16xf32> to vector<1x16xf32>
    %177 = vector.shape_cast %174 : vector<1x16xf32> to vector<1x1x16xf32>
    tpu.vector_store %arg8[%c0_54, %c0_55, %c0_56], %177 {strides = array<i32>} : memref<2x20x16xf32, #tpu.memory_space<vmem>>, vector<1x1x16xf32>,
    %178 = arith.subf %12, %173 : vector<1x16xf32>
    %c0_57 = arith.constant 0 : index
    %c1_58 = arith.constant 1 : index
    %c0_59 = arith.constant 0 : index
    %179 = vector.load %arg8[%c0_57, %c1_58, %c0_59] : memref<2x20x16xf32, #tpu.memory_space<vmem>>, vector<1x1x16xf32>
    %180 = vector.shape_cast %179 : vector<1x1x16xf32> to vector<1x16xf32>
    %181 = vector.shape_cast %178 : vector<1x16xf32> to vector<1x1x16xf32>
    tpu.vector_store %arg8[%c0_57, %c1_58, %c0_59], %181 {strides = array<i32>} : memref<2x20x16xf32, #tpu.memory_space<vmem>>, vector<1x1x16xf32>,
    %182 = vector.broadcast %173 : vector<1x16xf32> to vector<16x16xf32>
    %183 = arith.subf %152, %182 : vector<16x16xf32>
    %c0_60 = arith.constant 0 : index
    %c2_61 = arith.constant 2 : index
    %c0_62 = arith.constant 0 : index
    %184 = vector.load %arg8[%c0_60, %c2_61, %c0_62] : memref<2x20x16xf32, #tpu.memory_space<vmem>>, vector<1x16x16xf32>
    %185 = vector.shape_cast %184 : vector<1x16x16xf32> to vector<16x16xf32>
    %186 = vector.shape_cast %183 : vector<16x16xf32> to vector<1x16x16xf32>
    tpu.vector_store %arg8[%c0_60, %c2_61, %c0_62], %186 {strides = array<i32>} : memref<2x20x16xf32, #tpu.memory_space<vmem>>, vector<1x16x16xf32>,
    %187 = arith.subf %12, %173 : vector<1x16xf32>
    %c0_63 = arith.constant 0 : index
    %c18 = arith.constant 18 : index
    %c0_64 = arith.constant 0 : index
    %188 = vector.load %arg8[%c0_63, %c18, %c0_64] : memref<2x20x16xf32, #tpu.memory_space<vmem>>, vector<1x1x16xf32>
    %189 = vector.shape_cast %188 : vector<1x1x16xf32> to vector<1x16xf32>
    %190 = vector.shape_cast %187 : vector<1x16xf32> to vector<1x1x16xf32>
    tpu.vector_store %arg8[%c0_63, %c18, %c0_64], %190 {strides = array<i32>} : memref<2x20x16xf32, #tpu.memory_space<vmem>>, vector<1x1x16xf32>,
    %191 = arith.subf %11, %173 : vector<1x16xf32>
    %c0_65 = arith.constant 0 : index
    %c19 = arith.constant 19 : index
    %c0_66 = arith.constant 0 : index
    %192 = vector.load %arg8[%c0_65, %c19, %c0_66] : memref<2x20x16xf32, #tpu.memory_space<vmem>>, vector<1x1x16xf32>
    %193 = vector.shape_cast %192 : vector<1x1x16xf32> to vector<1x16xf32>
    %194 = vector.shape_cast %191 : vector<1x16xf32> to vector<1x1x16xf32>
    tpu.vector_store %arg8[%c0_65, %c19, %c0_66], %194 {strides = array<i32>} : memref<2x20x16xf32, #tpu.memory_space<vmem>>, vector<1x1x16xf32>,
    %195 = vector.extract_strided_slice %151 {offsets = [16, 0], sizes = [16, 16], strides = [1, 1]} : vector<32x16xf32> to vector<16x16xf32>
    %cst_67 = arith.constant dense<0xFF800000> : vector<16xf32>
    %196 = vector.multi_reduction <maximumf>, %195, %cst_67 [0] : vector<16x16xf32> to vector<16xf32>
    %197 = vector.shape_cast %196 : vector<16xf32> to vector<1x16xf32>
    %198 = arith.maximumf %11, %12 : vector<1x16xf32>
    %199 = arith.maximumf %197, %198 : vector<1x16xf32>
    %200 = vector.broadcast %199 : vector<1x16xf32> to vector<16x16xf32>
    %201 = arith.subf %195, %200 : vector<16x16xf32>
    %202 = math.exp %201 : vector<16x16xf32>
    %cst_68 = arith.constant dense<0.000000e+00> : vector<16xf32>
    %203 = vector.multi_reduction <add>, %202, %cst_68 [0] : vector<16x16xf32> to vector<16xf32>
    %204 = vector.shape_cast %203 : vector<16xf32> to vector<1x16xf32>
    %205 = arith.subf %11, %199 : vector<1x16xf32>
    %206 = math.exp %205 : vector<1x16xf32>
    %cst_69 = arith.constant 2.000000e+00 : f32
    %207 = vector.broadcast %cst_69 : f32 to vector<1x16xf32>
    %208 = arith.mulf %207, %206 : vector<1x16xf32>
    %209 = arith.addf %204, %208 : vector<1x16xf32>
    %210 = arith.subf %12, %199 : vector<1x16xf32>
    %211 = math.exp %210 : vector<1x16xf32>
    %cst_70 = arith.constant 2.000000e+00 : f32
    %212 = vector.broadcast %cst_70 : f32 to vector<1x16xf32>
    %213 = arith.mulf %212, %211 : vector<1x16xf32>
    %214 = arith.addf %209, %213 : vector<1x16xf32>
    %215 = math.log %214 : vector<1x16xf32>
    %216 = arith.addf %215, %199 : vector<1x16xf32>
    %217 = arith.subf %11, %216 : vector<1x16xf32>
    %c1_71 = arith.constant 1 : index
    %c0_72 = arith.constant 0 : index
    %c0_73 = arith.constant 0 : index
    %218 = vector.load %arg8[%c1_71, %c0_72, %c0_73] : memref<2x20x16xf32, #tpu.memory_space<vmem>>, vector<1x1x16xf32>
    %219 = vector.shape_cast %218 : vector<1x1x16xf32> to vector<1x16xf32>
    %220 = vector.shape_cast %217 : vector<1x16xf32> to vector<1x1x16xf32>
    tpu.vector_store %arg8[%c1_71, %c0_72, %c0_73], %220 {strides = array<i32>} : memref<2x20x16xf32, #tpu.memory_space<vmem>>, vector<1x1x16xf32>,
    %221 = arith.subf %12, %216 : vector<1x16xf32>
    %c1_74 = arith.constant 1 : index
    %c1_75 = arith.constant 1 : index
    %c0_76 = arith.constant 0 : index
    %222 = vector.load %arg8[%c1_74, %c1_75, %c0_76] : memref<2x20x16xf32, #tpu.memory_space<vmem>>, vector<1x1x16xf32>
    %223 = vector.shape_cast %222 : vector<1x1x16xf32> to vector<1x16xf32>
    %224 = vector.shape_cast %221 : vector<1x16xf32> to vector<1x1x16xf32>
    tpu.vector_store %arg8[%c1_74, %c1_75, %c0_76], %224 {strides = array<i32>} : memref<2x20x16xf32, #tpu.memory_space<vmem>>, vector<1x1x16xf32>,
    %225 = vector.broadcast %216 : vector<1x16xf32> to vector<16x16xf32>
    %226 = arith.subf %195, %225 : vector<16x16xf32>
    %c1_77 = arith.constant 1 : index
    %c2_78 = arith.constant 2 : index
    %c0_79 = arith.constant 0 : index
    %227 = vector.load %arg8[%c1_77, %c2_78, %c0_79] : memref<2x20x16xf32, #tpu.memory_space<vmem>>, vector<1x16x16xf32>
    %228 = vector.shape_cast %227 : vector<1x16x16xf32> to vector<16x16xf32>
    %229 = vector.shape_cast %226 : vector<16x16xf32> to vector<1x16x16xf32>
    tpu.vector_store %arg8[%c1_77, %c2_78, %c0_79], %229 {strides = array<i32>} : memref<2x20x16xf32, #tpu.memory_space<vmem>>, vector<1x16x16xf32>,
    %230 = arith.subf %12, %216 : vector<1x16xf32>
    %c1_80 = arith.constant 1 : index
    %c18_81 = arith.constant 18 : index
    %c0_82 = arith.constant 0 : index
    %231 = vector.load %arg8[%c1_80, %c18_81, %c0_82] : memref<2x20x16xf32, #tpu.memory_space<vmem>>, vector<1x1x16xf32>
    %232 = vector.shape_cast %231 : vector<1x1x16xf32> to vector<1x16xf32>
    %233 = vector.shape_cast %230 : vector<1x16xf32> to vector<1x1x16xf32>
    tpu.vector_store %arg8[%c1_80, %c18_81, %c0_82], %233 {strides = array<i32>} : memref<2x20x16xf32, #tpu.memory_space<vmem>>, vector<1x1x16xf32>,
    %234 = arith.subf %11, %216 : vector<1x16xf32>
    %c1_83 = arith.constant 1 : index
    %c19_84 = arith.constant 19 : index
    %c0_85 = arith.constant 0 : index
    %235 = vector.load %arg8[%c1_83, %c19_84, %c0_85] : memref<2x20x16xf32, #tpu.memory_space<vmem>>, vector<1x1x16xf32>
    %236 = vector.shape_cast %235 : vector<1x1x16xf32> to vector<1x16xf32>
    %237 = vector.shape_cast %234 : vector<1x16xf32> to vector<1x1x16xf32>
    tpu.vector_store %arg8[%c1_83, %c19_84, %c0_85], %237 {strides = array<i32>} : memref<2x20x16xf32, #tpu.memory_space<vmem>>, vector<1x1x16xf32>,
    return
  }
}

</mosaic_0001>

<llo_original>
// kernel: wavenet_forward.1
$region0: #{wavenet_forward.1}
  #allocation0 [shape = 'u32[]', space=smem, size = 0x4, offset = 0x4, fixed_abs, tag = 'smem constant byte address 0x4 - core index']
  #allocation1 [shape = 'u32[144,128]{1,0:T(1,128)}', space=vmem, size = 0x12000, scoped, tag = 'internal scratch']
  %s0 = inlined_call_operand.vmem [shape: bf16[32,24], index: 0, kind: input, shape index: {}]
  %s1 = inlined_call_operand.vmem [shape: f32[32,16], index: 1, kind: input, shape index: {}]
  %s2 = inlined_call_operand.vmem [shape: bf16[4,8,32], index: 2, kind: input, shape index: {}]
  %s3 = inlined_call_operand.vmem [shape: bf16[16,64], index: 3, kind: input, shape index: {}]
  %s4 = inlined_call_operand.vmem [shape: f32[1,64], index: 4, kind: input, shape index: {}]
  %s5 = inlined_call_operand.vmem [shape: bf16[4,8,16], index: 5, kind: input, shape index: {}]
  %s6 = inlined_call_operand.vmem [shape: bf16[32,16], index: 6, kind: input, shape index: {}]
  %s7 = inlined_call_operand.vmem [shape: f32[4,16], index: 7, kind: input, shape index: {}]
  %s8 = inlined_call_operand.vmem [shape: f32[2,20,16], index: 8, kind: output, shape index: {}]
  %s9 = sld [smem:[#allocation0]]
  $region42: #{wavenet_forward.1} parent=0
    _
  %s11 = ssub.s32 1, %s9
  %s12 = scalar_select 0, %s11, %s9
  // Predicated region
  $region2: #{wavenet_forward.1} parent=0 // pred_check
    _
  $region3: #{wavenet_forward.1} parent=0 // pred_check_branch
    %14 = sbr.rel (0) target = $region5
  $region4: #{wavenet_forward.1} parent=0 // pred_region
    _
  $region5: #{wavenet_forward.1} parent=0 // pred_fallthru
    _
  // Predicated region
  $region6: #{wavenet_forward.1} parent=0 // pred_check
    _
  $region7: #{wavenet_forward.1} parent=0 // pred_check_branch
    %16 = sbr.rel (0) target = $region9
  $region8: #{wavenet_forward.1} parent=0 // pred_region
    _
  $region9: #{wavenet_forward.1} parent=0 // pred_fallthru
    _
  // Predicated region
  $region10: #{wavenet_forward.1} parent=0 // pred_check
    _
  $region11: #{wavenet_forward.1} parent=0 // pred_check_branch
    %18 = sbr.rel (0) target = $region13
  $region12: #{wavenet_forward.1} parent=0 // pred_region
    _
  $region13: #{wavenet_forward.1} parent=0 // pred_fallthru
    _
  // Predicated region
  $region14: #{wavenet_forward.1} parent=0 // pred_check
    _
  $region15: #{wavenet_forward.1} parent=0 // pred_check_branch
    %20 = sbr.rel (0) target = $region17
  $region16: #{wavenet_forward.1} parent=0 // pred_region
    _
  $region17: #{wavenet_forward.1} parent=0 // pred_fallthru
    _
  // Predicated region
  $region18: #{wavenet_forward.1} parent=0 // pred_check
    _
  $region19: #{wavenet_forward.1} parent=0 // pred_check_branch
    %22 = sbr.rel (0) target = $region21
  $region20: #{wavenet_forward.1} parent=0 // pred_region
    _
  $region21: #{wavenet_forward.1} parent=0 // pred_fallthru
    _
  // Predicated region
  $region22: #{wavenet_forward.1} parent=0 // pred_check
    _
  $region23: #{wavenet_forward.1} parent=0 // pred_check_branch
    %24 = sbr.rel (0) target = $region25
  $region24: #{wavenet_forward.1} parent=0 // pred_region
    _
  $region25: #{wavenet_forward.1} parent=0 // pred_fallthru
    _
  // Predicated region
  $region26: #{wavenet_forward.1} parent=0 // pred_check
    _
  $region27: #{wavenet_forward.1} parent=0 // pred_check_branch
    %26 = sbr.rel (0) target = $region29
  $region28: #{wavenet_forward.1} parent=0 // pred_region
    _
  $region29: #{wavenet_forward.1} parent=0 // pred_fallthru
    _
  // Predicated region
  $region30: #{wavenet_forward.1} parent=0 // pred_check
    _
  $region31: #{wavenet_forward.1} parent=0 // pred_check_branch
    %28 = sbr.rel (0) target = $region33
  $region32: #{wavenet_forward.1} parent=0 // pred_region
    _
  $region33: #{wavenet_forward.1} parent=0 // pred_fallthru
    _
  %v30 = vld [vmem:[%s0] sm:$0xf]
  %v31 = vld [vmem:[%s0 + $0x4] sm:$0xf]
  %v32 = vld [vmem:[%s0 + $0x8] sm:$0xf]
  %v33 = vld [vmem:[%s0 + $0xc] sm:$0xf]
  %v34 = vld [vmem:[%s1] sm:$0xff]
  %v35 = vld [vmem:[%s1 + $0x8] sm:$0xff]
  %v36 = vld [vmem:[%s1 + $0x10] sm:$0xff]
  %v37 = vld [vmem:[%s1 + $0x18] sm:$0xff]
  %v38 = vld [vmem:[%s6] sm:$0xf]
  %v39 = vld [vmem:[%s6 + $0x4] sm:$0xf]
  %v40 = vld [vmem:[%s6 + $0x8] sm:$0xf]
  %v41 = vld [vmem:[%s6 + $0xc] sm:$0xf]
  %v42 = vld [vmem:[%s7] sm:$0xf]
  %v43 = vld [vmem:[%s3] sm:$0xf]
  %v44 = vld [vmem:[%s3 + $0x4] sm:$0xf]
  %v45 = vld [vmem:[%s4] sm:$0x1]
  %v47 = vlaneseq
  %v48 = vshrl.u32 %v47, 7
  %v49 = vsub.s32 0, %v48
  %v50 = vrot.slane %v45, %v49
  %v56 = vunpack.c.l.b16 %v30
  %v57 = vunpack.c.l.b16 %v31
  %v58 = vunpack.c.l.b16 %v32
  %v59 = vunpack.c.l.b16 %v33
  %v60 = vpack.c.b16 %v57, %v56
  %v61 = vpack.c.b16 %v59, %v58
  %62 = vrot.lane.b32.xlu0 %v60, 120
  %v63 = vpop.permute.xlu0 %62
  %64 = vrot.lane.b32.xlu0 %v61, 120
  %v65 = vpop.permute.xlu0 %64
  %v68 = vunpack.c.l.b16 %v43
  %v69 = vunpack.c.l.b16 %v44
  %v70 = vpack.c.b16 %v69, %v68
  %vm72 = vcmask 130048
  %v74 = vsel %vm72, %v63, 0
  %v77 = vsel %vm72, %v65, 0
  %79 = vmatprep.subr.bf16.mxu0 0
  %80 = vmatpush1.bf16.msra.mxu0 0
  %81 = vmatprep.subr.bf16.mxu0 0
  %82 = vmatpush1.bf16.msra.mxu0 0
  %83 = vmatprep.subr.bf16.mxu0 0
  %84 = vmatpush1.bf16.msra.mxu0 0
  %85 = vmatprep.subr.bf16.mxu0 0
  %86 = vmatpush1.bf16.msra.mxu0 0
  %87 = vmatprep.subr.bf16.mxu0 0
  %88 = vmatpush1.bf16.msra.mxu0 0
  %89 = vmatprep.subr.bf16.mxu0 0
  %90 = vmatpush1.bf16.msra.mxu0 0
  %91 = vmatprep.subr.bf16.mxu0 0
  %92 = vmatpush1.bf16.msra.mxu0 0
  %93 = vmatprep.subr.bf16.mxu0 0
  %94 = vmatpush1.bf16.msra.mxu0 %v70
  %95 = vmatprep.subr.bf16.mxu0 0
  %96 = vmatpush2.bf16.msra.mxu0 0
  %97 = vmatprep.subr.bf16.mxu0 0
  %98 = vmatpush2.bf16.msra.mxu0 0
  %99 = vmatprep.subr.bf16.mxu0 0
  %100 = vmatpush2.bf16.msra.mxu0 0
  %101 = vmatprep.subr.bf16.mxu0 0
  %102 = vmatpush2.bf16.msra.mxu0 0
  %103 = vmatprep.subr.bf16.mxu0 0
  %104 = vmatpush2.bf16.msra.mxu0 0
  %105 = vmatprep.subr.bf16.mxu0 0
  %106 = vmatpush2.bf16.msra.mxu0 0
  %107 = vmatprep.subr.bf16.mxu0 0
  %108 = vmatpush2.bf16.msra.mxu0 0
  %109 = vmatprep.subr.bf16.mxu0 0
  %110 = vmatpush2.bf16.msra.mxu0 0
  %111 = vmatprep.mubr.bf16.mxu0 0
  %112 = vmatmul.mubr.bf16.gmra.mxu0 %v74
  %v113 = vpop.f32.mrf.mxu0
  %v114 = vadd.f32 %v50, %v113
  %v115 = vpop.f32.mrf.mxu0
  %v116 = vpop.f32.mrf.mxu0
  %v117 = vadd.f32 %v50, %v116
  %v118 = vpop.f32.mrf.mxu0
  %119 = vmatprep.mubr.bf16.mxu0 0
  %120 = vmatmul.mubr.bf16.gmra.mxu0 %v77
  %v121 = vpop.f32.mrf.mxu0
  %v122 = vadd.f32 %v50, %v121
  %v123 = vpop.f32.mrf.mxu0
  %v124 = vpop.f32.mrf.mxu0
  %v125 = vadd.f32 %v50, %v124
  %v126 = vpop.f32.mrf.mxu0
  %127 = vdwg.mxu0
  %v128 = vlaneseq
  %v129 = vshrl.u32 %v128, 7
  %v130 = vsub.s32 0, %v129
  %v131 = vrot.slane %v42, %v130
  %vm132 = vcmask 64512
  %v134 = vsel %vm132, %v60, 0
  %v137 = vsel %vm132, %v61, 0
  %vm139 = vcmask 1043456
  %v141 = vsel %vm139, %v38, 0
  %143 = vmatprep.subr.bf16.mxu0 0
  %144 = vmatpush1.bf16.msra.mxu0 0
  %145 = vmatprep.subr.bf16.mxu0 0
  %146 = vmatpush1.bf16.msra.mxu0 0
  %147 = vmatprep.subr.bf16.mxu0 0
  %148 = vmatpush1.bf16.msra.mxu0 0
  %149 = vmatprep.subr.bf16.mxu0 0
  %150 = vmatpush1.bf16.msra.mxu0 0
  %151 = vmatprep.subr.bf16.mxu0 0
  %152 = vmatpush1.bf16.msra.mxu0 0
  %153 = vmatprep.subr.bf16.mxu0 0
  %154 = vmatpush1.bf16.msra.mxu0 0
  %155 = vmatprep.subr.bf16.mxu0 0
  %156 = vmatpush1.bf16.msra.mxu0 0
  %157 = vmatprep.subr.bf16.mxu0 0
  %158 = vmatpush1.bf16.msra.mxu0 %v141
  %159 = vmatprep.subr.bf16.mxu0 0
  %160 = vmatpush2.bf16.msra.mxu0 0
  %161 = vmatprep.subr.bf16.mxu0 0
  %162 = vmatpush2.bf16.msra.mxu0 0
  %163 = vmatprep.subr.bf16.mxu0 0
  %164 = vmatpush2.bf16.msra.mxu0 0
  %165 = vmatprep.subr.bf16.mxu0 0
  %166 = vmatpush2.bf16.msra.mxu0 0
  %167 = vmatprep.subr.bf16.mxu0 0
  %168 = vmatpush2.bf16.msra.mxu0 0
  %169 = vmatprep.subr.bf16.mxu0 0
  %170 = vmatpush2.bf16.msra.mxu0 0
  %171 = vmatprep.subr.bf16.mxu0 0
  %172 = vmatpush2.bf16.msra.mxu0 0
  %173 = vmatprep.subr.bf16.mxu0 0
  %174 = vmatpush2.bf16.msra.mxu0 0
  %175 = vmatprep.mubr.bf16.mxu0 0
  %176 = vmatmul.mubr.bf16.gmra.mxu0 %v134
  %v177 = vpop.f32.mrf.mxu0
  %v178 = vadd.f32 %v131, %v177
  %v179 = vpop.f32.mrf.mxu0
  %v180 = vpop.f32.mrf.mxu0
  %v181 = vadd.f32 %v131, %v180
  %v182 = vpop.f32.mrf.mxu0
  %183 = vmatprep.mubr.bf16.mxu0 0
  %184 = vmatmul.mubr.bf16.gmra.mxu0 %v137
  %v185 = vpop.f32.mrf.mxu0
  %v186 = vadd.f32 %v131, %v185
  %v187 = vpop.f32.mrf.mxu0
  %v188 = vpop.f32.mrf.mxu0
  %v189 = vadd.f32 %v131, %v188
  %v190 = vpop.f32.mrf.mxu0
  %191 = vdwg.mxu0
  %v192 = vpack.c.bf16 %v181, %v178
  %v193 = vpack.c.bf16 %v189, %v186
  %v194 = vld [vmem:[%s2] sm:$0xf]
  %v196 = vsel %vm132, %v192, 0
  %v199 = vsel %vm132, %v193, 0
  %v202 = vsel %vm139, %v194, 0
  %204 = vmatprep.subr.bf16.mxu0 0
  %205 = vmatpush1.bf16.msra.mxu0 0
  %206 = vmatprep.subr.bf16.mxu0 0
  %207 = vmatpush1.bf16.msra.mxu0 0
  %208 = vmatprep.subr.bf16.mxu0 0
  %209 = vmatpush1.bf16.msra.mxu0 0
  %210 = vmatprep.subr.bf16.mxu0 0
  %211 = vmatpush1.bf16.msra.mxu0 0
  %212 = vmatprep.subr.bf16.mxu0 0
  %213 = vmatpush1.bf16.msra.mxu0 0
  %214 = vmatprep.subr.bf16.mxu0 0
  %215 = vmatpush1.bf16.msra.mxu0 0
  %216 = vmatprep.subr.bf16.mxu0 0
  %217 = vmatpush1.bf16.msra.mxu0 0
  %218 = vmatprep.subr.bf16.mxu0 0
  %219 = vmatpush1.bf16.msra.mxu0 %v202
  %220 = vmatprep.subr.bf16.mxu0 0
  %221 = vmatpush2.bf16.msra.mxu0 0
  %222 = vmatprep.subr.bf16.mxu0 0
  %223 = vmatpush2.bf16.msra.mxu0 0
  %224 = vmatprep.subr.bf16.mxu0 0
  %225 = vmatpush2.bf16.msra.mxu0 0
  %226 = vmatprep.subr.bf16.mxu0 0
  %227 = vmatpush2.bf16.msra.mxu0 0
  %228 = vmatprep.subr.bf16.mxu0 0
  %229 = vmatpush2.bf16.msra.mxu0 0
  %230 = vmatprep.subr.bf16.mxu0 0
  %231 = vmatpush2.bf16.msra.mxu0 0
  %232 = vmatprep.subr.bf16.mxu0 0
  %233 = vmatpush2.bf16.msra.mxu0 0
  %234 = vmatprep.subr.bf16.mxu0 0
  %235 = vmatpush2.bf16.msra.mxu0 0
  %236 = vmatprep.mubr.bf16.mxu0 0
  %237 = vmatmul.mubr.bf16.gmra.mxu0 %v196
  %v238 = vpop.f32.mrf.mxu0
  %v239 = vadd.f32 0.0, %v238
  %v240 = vpop.f32.mrf.mxu0
  %v241 = vpop.f32.mrf.mxu0
  %v242 = vadd.f32 0.0, %v241
  %v243 = vpop.f32.mrf.mxu0
  %244 = vmatprep.mubr.bf16.mxu0 0
  %245 = vmatmul.mubr.bf16.gmra.mxu0 %v199
  %v246 = vpop.f32.mrf.mxu0
  %v247 = vadd.f32 0.0, %v246
  %v248 = vpop.f32.mrf.mxu0
  %v249 = vpop.f32.mrf.mxu0
  %v250 = vadd.f32 0.0, %v249
  %v251 = vpop.f32.mrf.mxu0
  %252 = vdwg.mxu0
  %v254 = vrot.slane %v250, 7
  %vm259 = vcmask 1040384
  %v260 = vrot.slane %v239, 7
  %v261 = vrot.slane %v242, 7
  %v262 = vsel %vm259, %v260, %v261
  %v263 = vrot.slane %v247, 7
  %v264 = vsel %vm259, %v261, %v263
  %v265 = vsel %vm259, %v263, %v254
  %v270 = vsel %vm259, %v254, %v260
  %v271 = vmul.f32 %v270, %v34
  %v272 = vmul.f32 %v262, %v35
  %v273 = vmul.f32 %v264, %v36
  %v274 = vmul.f32 %v265, %v37
  %275 = vrot.lane.b32.xlu0 %v239, 112
  %v276 = vpop.permute.xlu0 %275
  %277 = vrot.lane.b32.xlu0 %v242, 112
  %v278 = vpop.permute.xlu0 %277
  %279 = vrot.lane.b32.xlu0 %v247, 112
  %v280 = vpop.permute.xlu0 %279
  %281 = vrot.lane.b32.xlu0 %v250, 112
  %v282 = vpop.permute.xlu0 %281
  %v287 = vadd.f32 %v271, %v276
  %v288 = vadd.f32 %v272, %v278
  %v289 = vadd.f32 %v273, %v280
  %v290 = vadd.f32 %v274, %v282
  %v291 = vadd.f32 %v287, %v114
  %v292 = vadd.f32 %v288, %v117
  %v293 = vadd.f32 %v289, %v122
  %v294 = vadd.f32 %v290, %v125
  %v295 = vtanh.pop %v291
  %v296 = vtanh.pop %v292
  %v297 = vtanh.pop %v293
  %v298 = vtanh.pop %v294
  %v299 = vxor.u32 %v291, 2147483648
  %v300 = vxor.u32 %v292, 2147483648
  %v301 = vxor.u32 %v293, 2147483648
  %v302 = vxor.u32 %v294, 2147483648
  %v303 = vmul.f32 %v299, 1.442695
  %v304 = vpow.pop %v303
  %v305 = vmul.f32 %v300, 1.442695
  %v306 = vpow.pop %v305
  %v307 = vmul.f32 %v301, 1.442695
  %v308 = vpow.pop %v307
  %v309 = vmul.f32 %v302, 1.442695
  %v310 = vpow.pop %v309
  %v311 = vadd.f32 %v304, 1.0
  %v312 = vadd.f32 %v306, 1.0
  %v313 = vadd.f32 %v308, 1.0
  %v314 = vadd.f32 %v310, 1.0
  %v315 = vrcp.pop %v311
  %v316 = vmul.f32 1.0, %v315
  %v317 = vrcp.pop %v312
  %v318 = vmul.f32 1.0, %v317
  %v319 = vrcp.pop %v313
  %v320 = vmul.f32 1.0, %v319
  %v321 = vrcp.pop %v314
  %v322 = vmul.f32 1.0, %v321
  %327 = vrot.lane.b32.xlu0 %v316, 120
  %v328 = vpop.permute.xlu0 %327
  %329 = vrot.lane.b32.xlu0 %v318, 120
  %v330 = vpop.permute.xlu0 %329
  %331 = vrot.lane.b32.xlu0 %v320, 120
  %v332 = vpop.permute.xlu0 %331
  %333 = vrot.lane.b32.xlu0 %v322, 120
  %v334 = vpop.permute.xlu0 %333
  %v339 = vmul.f32 %v295, %v328
  %v340 = vmul.f32 %v296, %v330
  %v341 = vmul.f32 %v297, %v332
  %v342 = vmul.f32 %v298, %v334
  %v343 = vpack.c.bf16 %v340, %v339
  %v344 = vpack.c.bf16 %v342, %v341
  %v345 = vld [vmem:[%s5] sm:$0xf]
  %v347 = vsel %vm132, %v343, 0
  %v350 = vsel %vm132, %v344, 0
  %v353 = vsel %vm139, %v345, 0
  %355 = vmatprep.subr.bf16.mxu0 0
  %356 = vmatpush1.bf16.msra.mxu0 0
  %357 = vmatprep.subr.bf16.mxu0 0
  %358 = vmatpush1.bf16.msra.mxu0 0
  %359 = vmatprep.subr.bf16.mxu0 0
  %360 = vmatpush1.bf16.msra.mxu0 0
  %361 = vmatprep.subr.bf16.mxu0 0
  %362 = vmatpush1.bf16.msra.mxu0 0
  %363 = vmatprep.subr.bf16.mxu0 0
  %364 = vmatpush1.bf16.msra.mxu0 0
  %365 = vmatprep.subr.bf16.mxu0 0
  %366 = vmatpush1.bf16.msra.mxu0 0
  %367 = vmatprep.subr.bf16.mxu0 0
  %368 = vmatpush1.bf16.msra.mxu0 0
  %369 = vmatprep.subr.bf16.mxu0 0
  %370 = vmatpush1.bf16.msra.mxu0 %v353
  %371 = vmatprep.subr.bf16.mxu0 0
  %372 = vmatpush2.bf16.msra.mxu0 0
  %373 = vmatprep.subr.bf16.mxu0 0
  %374 = vmatpush2.bf16.msra.mxu0 0
  %375 = vmatprep.subr.bf16.mxu0 0
  %376 = vmatpush2.bf16.msra.mxu0 0
  %377 = vmatprep.subr.bf16.mxu0 0
  %378 = vmatpush2.bf16.msra.mxu0 0
  %379 = vmatprep.subr.bf16.mxu0 0
  %380 = vmatpush2.bf16.msra.mxu0 0
  %381 = vmatprep.subr.bf16.mxu0 0
  %382 = vmatpush2.bf16.msra.mxu0 0
  %383 = vmatprep.subr.bf16.mxu0 0
  %384 = vmatpush2.bf16.msra.mxu0 0
  %385 = vmatprep.subr.bf16.mxu0 0
  %386 = vmatpush2.bf16.msra.mxu0 0
  %387 = vmatprep.mubr.bf16.mxu0 0
  %388 = vmatmul.mubr.bf16.gmra.mxu0 %v347
  %v389 = vpop.f32.mrf.mxu0
  %v390 = vadd.f32 0.0, %v389
  %v391 = vpop.f32.mrf.mxu0
  %v392 = vpop.f32.mrf.mxu0
  %v393 = vadd.f32 0.0, %v392
  %v394 = vpop.f32.mrf.mxu0
  %395 = vmatprep.mubr.bf16.mxu0 0
  %396 = vmatmul.mubr.bf16.gmra.mxu0 %v350
  %v397 = vpop.f32.mrf.mxu0
  %v398 = vadd.f32 0.0, %v397
  %v399 = vpop.f32.mrf.mxu0
  %v400 = vpop.f32.mrf.mxu0
  %v401 = vadd.f32 0.0, %v400
  %v402 = vpop.f32.mrf.mxu0
  %403 = vdwg.mxu0
  %v404 = vadd.f32 %v178, %v390
  %v405 = vadd.f32 %v181, %v393
  %v406 = vadd.f32 %v186, %v398
  %v407 = vadd.f32 %v189, %v401
  %v408 = vadd.f32 %v390, 0.0
  %v409 = vadd.f32 %v393, 0.0
  %v410 = vadd.f32 %v398, 0.0
  %v411 = vadd.f32 %v401, 0.0
  %v412 = vpack.c.bf16 %v405, %v404
  %v413 = vpack.c.bf16 %v407, %v406
  %s414 = scalar_lea.vmem %s2, 4
  %v415 = vld [vmem:[%s414] sm:$0xf]
  %v417 = vsel %vm132, %v412, 0
  %v420 = vsel %vm132, %v413, 0
  %v423 = vsel %vm139, %v415, 0
  %425 = vmatprep.subr.bf16.mxu0 0
  %426 = vmatpush1.bf16.msra.mxu0 0
  %427 = vmatprep.subr.bf16.mxu0 0
  %428 = vmatpush1.bf16.msra.mxu0 0
  %429 = vmatprep.subr.bf16.mxu0 0
  %430 = vmatpush1.bf16.msra.mxu0 0
  %431 = vmatprep.subr.bf16.mxu0 0
  %432 = vmatpush1.bf16.msra.mxu0 0
  %433 = vmatprep.subr.bf16.mxu0 0
  %434 = vmatpush1.bf16.msra.mxu0 0
  %435 = vmatprep.subr.bf16.mxu0 0
  %436 = vmatpush1.bf16.msra.mxu0 0
  %437 = vmatprep.subr.bf16.mxu0 0
  %438 = vmatpush1.bf16.msra.mxu0 0
  %439 = vmatprep.subr.bf16.mxu0 0
  %440 = vmatpush1.bf16.msra.mxu0 %v423
  %441 = vmatprep.subr.bf16.mxu0 0
  %442 = vmatpush2.bf16.msra.mxu0 0
  %443 = vmatprep.subr.bf16.mxu0 0
  %444 = vmatpush2.bf16.msra.mxu0 0
  %445 = vmatprep.subr.bf16.mxu0 0
  %446 = vmatpush2.bf16.msra.mxu0 0
  %447 = vmatprep.subr.bf16.mxu0 0
  %448 = vmatpush2.bf16.msra.mxu0 0
  %449 = vmatprep.subr.bf16.mxu0 0
  %450 = vmatpush2.bf16.msra.mxu0 0
  %451 = vmatprep.subr.bf16.mxu0 0
  %452 = vmatpush2.bf16.msra.mxu0 0
  %453 = vmatprep.subr.bf16.mxu0 0
  %454 = vmatpush2.bf16.msra.mxu0 0
  %455 = vmatprep.subr.bf16.mxu0 0
  %456 = vmatpush2.bf16.msra.mxu0 0
  %457 = vmatprep.mubr.bf16.mxu0 0
  %458 = vmatmul.mubr.bf16.gmra.mxu0 %v417
  %v459 = vpop.f32.mrf.mxu0
  %v460 = vadd.f32 0.0, %v459
  %v461 = vpop.f32.mrf.mxu0
  %v462 = vpop.f32.mrf.mxu0
  %v463 = vadd.f32 0.0, %v462
  %v464 = vpop.f32.mrf.mxu0
  %465 = vmatprep.mubr.bf16.mxu0 0
  %466 = vmatmul.mubr.bf16.gmra.mxu0 %v420
  %v467 = vpop.f32.mrf.mxu0
  %v468 = vadd.f32 0.0, %v467
  %v469 = vpop.f32.mrf.mxu0
  %v470 = vpop.f32.mrf.mxu0
  %v471 = vadd.f32 0.0, %v470
  %v472 = vpop.f32.mrf.mxu0
  %473 = vdwg.mxu0
  %v475 = vrot.slane %v471, 7
  %v480 = vrot.slane %v460, 7
  %v481 = vrot.slane %v463, 7
  %v482 = vsel %vm259, %v480, %v481
  %v483 = vrot.slane %v468, 7
  %v484 = vsel %vm259, %v481, %v483
  %v485 = vsel %vm259, %v483, %v475
  %v490 = vsel %vm259, %v475, %v480
  %v491 = vmul.f32 %v490, %v34
  %v492 = vmul.f32 %v482, %v35
  %v493 = vmul.f32 %v484, %v36
  %v494 = vmul.f32 %v485, %v37
  %495 = vrot.lane.b32.xlu0 %v460, 112
  %v496 = vpop.permute.xlu0 %495
  %497 = vrot.lane.b32.xlu0 %v463, 112
  %v498 = vpop.permute.xlu0 %497
  %499 = vrot.lane.b32.xlu0 %v468, 112
  %v500 = vpop.permute.xlu0 %499
  %501 = vrot.lane.b32.xlu0 %v471, 112
  %v502 = vpop.permute.xlu0 %501
  %v507 = vadd.f32 %v491, %v496
  %v508 = vadd.f32 %v492, %v498
  %v509 = vadd.f32 %v493, %v500
  %v510 = vadd.f32 %v494, %v502
  %515 = vrot.lane.b32.xlu0 %v114, 112
  %v516 = vpop.permute.xlu0 %515
  %517 = vrot.lane.b32.xlu0 %v117, 112
  %v518 = vpop.permute.xlu0 %517
  %519 = vrot.lane.b32.xlu0 %v122, 112
  %v520 = vpop.permute.xlu0 %519
  %521 = vrot.lane.b32.xlu0 %v125, 112
  %v522 = vpop.permute.xlu0 %521
  %v527 = vadd.f32 %v507, %v516
  %v528 = vadd.f32 %v508, %v518
  %v529 = vadd.f32 %v509, %v520
  %v530 = vadd.f32 %v510, %v522
  %v531 = vtanh.pop %v527
  %v532 = vtanh.pop %v528
  %v533 = vtanh.pop %v529
  %v534 = vtanh.pop %v530
  %v535 = vxor.u32 %v527, 2147483648
  %v536 = vxor.u32 %v528, 2147483648
  %v537 = vxor.u32 %v529, 2147483648
  %v538 = vxor.u32 %v530, 2147483648
  %v539 = vmul.f32 %v535, 1.442695
  %v540 = vpow.pop %v539
  %v541 = vmul.f32 %v536, 1.442695
  %v542 = vpow.pop %v541
  %v543 = vmul.f32 %v537, 1.442695
  %v544 = vpow.pop %v543
  %v545 = vmul.f32 %v538, 1.442695
  %v546 = vpow.pop %v545
  %v547 = vadd.f32 %v540, 1.0
  %v548 = vadd.f32 %v542, 1.0
  %v549 = vadd.f32 %v544, 1.0
  %v550 = vadd.f32 %v546, 1.0
  %v551 = vrcp.pop %v547
  %v552 = vmul.f32 1.0, %v551
  %v553 = vrcp.pop %v548
  %v554 = vmul.f32 1.0, %v553
  %v555 = vrcp.pop %v549
  %v556 = vmul.f32 1.0, %v555
  %v557 = vrcp.pop %v550
  %v558 = vmul.f32 1.0, %v557
  %563 = vrot.lane.b32.xlu0 %v552, 120
  %v564 = vpop.permute.xlu0 %563
  %565 = vrot.lane.b32.xlu0 %v554, 120
  %v566 = vpop.permute.xlu0 %565
  %567 = vrot.lane.b32.xlu0 %v556, 120
  %v568 = vpop.permute.xlu0 %567
  %569 = vrot.lane.b32.xlu0 %v558, 120
  %v570 = vpop.permute.xlu0 %569
  %v575 = vmul.f32 %v531, %v564
  %v576 = vmul.f32 %v532, %v566
  %v577 = vmul.f32 %v533, %v568
  %v578 = vmul.f32 %v534, %v570
  %v579 = vpack.c.bf16 %v576, %v575
  %v580 = vpack.c.bf16 %v578, %v577
  %s581 = scalar_lea.vmem %s5, 4
  %v582 = vld [vmem:[%s581] sm:$0xf]
  %v584 = vsel %vm132, %v579, 0
  %v587 = vsel %vm132, %v580, 0
  %v590 = vsel %vm139, %v582, 0
  %592 = vmatprep.subr.bf16.mxu0 0
  %593 = vmatpush1.bf16.msra.mxu0 0
  %594 = vmatprep.subr.bf16.mxu0 0
  %595 = vmatpush1.bf16.msra.mxu0 0
  %596 = vmatprep.subr.bf16.mxu0 0
  %597 = vmatpush1.bf16.msra.mxu0 0
  %598 = vmatprep.subr.bf16.mxu0 0
  %599 = vmatpush1.bf16.msra.mxu0 0
  %600 = vmatprep.subr.bf16.mxu0 0
  %601 = vmatpush1.bf16.msra.mxu0 0
  %602 = vmatprep.subr.bf16.mxu0 0
  %603 = vmatpush1.bf16.msra.mxu0 0
  %604 = vmatprep.subr.bf16.mxu0 0
  %605 = vmatpush1.bf16.msra.mxu0 0
  %606 = vmatprep.subr.bf16.mxu0 0
  %607 = vmatpush1.bf16.msra.mxu0 %v590
  %608 = vmatprep.subr.bf16.mxu0 0
  %609 = vmatpush2.bf16.msra.mxu0 0
  %610 = vmatprep.subr.bf16.mxu0 0
  %611 = vmatpush2.bf16.msra.mxu0 0
  %612 = vmatprep.subr.bf16.mxu0 0
  %613 = vmatpush2.bf16.msra.mxu0 0
  %614 = vmatprep.subr.bf16.mxu0 0
  %615 = vmatpush2.bf16.msra.mxu0 0
  %616 = vmatprep.subr.bf16.mxu0 0
  %617 = vmatpush2.bf16.msra.mxu0 0
  %618 = vmatprep.subr.bf16.mxu0 0
  %619 = vmatpush2.bf16.msra.mxu0 0
  %620 = vmatprep.subr.bf16.mxu0 0
  %621 = vmatpush2.bf16.msra.mxu0 0
  %622 = vmatprep.subr.bf16.mxu0 0
  %623 = vmatpush2.bf16.msra.mxu0 0
  %624 = vmatprep.mubr.bf16.mxu0 0
  %625 = vmatmul.mubr.bf16.gmra.mxu0 %v584
  %v626 = vpop.f32.mrf.mxu0
  %v627 = vadd.f32 0.0, %v626
  %v628 = vpop.f32.mrf.mxu0
  %v629 = vpop.f32.mrf.mxu0
  %v630 = vadd.f32 0.0, %v629
  %v631 = vpop.f32.mrf.mxu0
  %632 = vmatprep.mubr.bf16.mxu0 0
  %633 = vmatmul.mubr.bf16.gmra.mxu0 %v587
  %v634 = vpop.f32.mrf.mxu0
  %v635 = vadd.f32 0.0, %v634
  %v636 = vpop.f32.mrf.mxu0
  %v637 = vpop.f32.mrf.mxu0
  %v638 = vadd.f32 0.0, %v637
  %v639 = vpop.f32.mrf.mxu0
  %640 = vdwg.mxu0
  %v641 = vadd.f32 %v404, %v627
  %v642 = vadd.f32 %v405, %v630
  %v643 = vadd.f32 %v406, %v635
  %v644 = vadd.f32 %v407, %v638
  %v645 = vadd.f32 %v408, %v627
  %v646 = vadd.f32 %v409, %v630
  %v647 = vadd.f32 %v410, %v635
  %v648 = vadd.f32 %v411, %v638
  %v649 = vpack.c.bf16 %v642, %v641
  %v650 = vpack.c.bf16 %v644, %v643
  %s651 = scalar_lea.vmem %s2, 8
  %v652 = vld [vmem:[%s651] sm:$0xf]
  %v654 = vsel %vm132, %v649, 0
  %v657 = vsel %vm132, %v650, 0
  %v660 = vsel %vm139, %v652, 0
  %662 = vmatprep.subr.bf16.mxu0 0
  %663 = vmatpush1.bf16.msra.mxu0 0
  %664 = vmatprep.subr.bf16.mxu0 0
  %665 = vmatpush1.bf16.msra.mxu0 0
  %666 = vmatprep.subr.bf16.mxu0 0
  %667 = vmatpush1.bf16.msra.mxu0 0
  %668 = vmatprep.subr.bf16.mxu0 0
  %669 = vmatpush1.bf16.msra.mxu0 0
  %670 = vmatprep.subr.bf16.mxu0 0
  %671 = vmatpush1.bf16.msra.mxu0 0
  %672 = vmatprep.subr.bf16.mxu0 0
  %673 = vmatpush1.bf16.msra.mxu0 0
  %674 = vmatprep.subr.bf16.mxu0 0
  %675 = vmatpush1.bf16.msra.mxu0 0
  %676 = vmatprep.subr.bf16.mxu0 0
  %677 = vmatpush1.bf16.msra.mxu0 %v660
  %678 = vmatprep.subr.bf16.mxu0 0
  %679 = vmatpush2.bf16.msra.mxu0 0
  %680 = vmatprep.subr.bf16.mxu0 0
  %681 = vmatpush2.bf16.msra.mxu0 0
  %682 = vmatprep.subr.bf16.mxu0 0
  %683 = vmatpush2.bf16.msra.mxu0 0
  %684 = vmatprep.subr.bf16.mxu0 0
  %685 = vmatpush2.bf16.msra.mxu0 0
  %686 = vmatprep.subr.bf16.mxu0 0
  %687 = vmatpush2.bf16.msra.mxu0 0
  %688 = vmatprep.subr.bf16.mxu0 0
  %689 = vmatpush2.bf16.msra.mxu0 0
  %690 = vmatprep.subr.bf16.mxu0 0
  %691 = vmatpush2.bf16.msra.mxu0 0
  %692 = vmatprep.subr.bf16.mxu0 0
  %693 = vmatpush2.bf16.msra.mxu0 0
  %694 = vmatprep.mubr.bf16.mxu0 0
  %695 = vmatmul.mubr.bf16.gmra.mxu0 %v654
  %v696 = vpop.f32.mrf.mxu0
  %v697 = vadd.f32 0.0, %v696
  %v698 = vpop.f32.mrf.mxu0
  %v699 = vpop.f32.mrf.mxu0
  %v700 = vadd.f32 0.0, %v699
  %v701 = vpop.f32.mrf.mxu0
  %702 = vmatprep.mubr.bf16.mxu0 0
  %703 = vmatmul.mubr.bf16.gmra.mxu0 %v657
  %v704 = vpop.f32.mrf.mxu0
  %v705 = vadd.f32 0.0, %v704
  %v706 = vpop.f32.mrf.mxu0
  %v707 = vpop.f32.mrf.mxu0
  %v708 = vadd.f32 0.0, %v707
  %v709 = vpop.f32.mrf.mxu0
  %710 = vdwg.mxu0
  %v712 = vrot.slane %v708, 7
  %v717 = vrot.slane %v697, 7
  %v718 = vrot.slane %v700, 7
  %v719 = vsel %vm259, %v717, %v718
  %v720 = vrot.slane %v705, 7
  %v721 = vsel %vm259, %v718, %v720
  %v722 = vsel %vm259, %v720, %v712
  %v727 = vsel %vm259, %v712, %v717
  %v728 = vmul.f32 %v727, %v34
  %v729 = vmul.f32 %v719, %v35
  %v730 = vmul.f32 %v721, %v36
  %v731 = vmul.f32 %v722, %v37
  %732 = vrot.lane.b32.xlu0 %v697, 112
  %v733 = vpop.permute.xlu0 %732
  %734 = vrot.lane.b32.xlu0 %v700, 112
  %v735 = vpop.permute.xlu0 %734
  %736 = vrot.lane.b32.xlu0 %v705, 112
  %v737 = vpop.permute.xlu0 %736
  %738 = vrot.lane.b32.xlu0 %v708, 112
  %v739 = vpop.permute.xlu0 %738
  %v744 = vadd.f32 %v728, %v733
  %v745 = vadd.f32 %v729, %v735
  %v746 = vadd.f32 %v730, %v737
  %v747 = vadd.f32 %v731, %v739
  %748 = vrot.lane.b32.xlu0 %v114, 96
  %v749 = vpop.permute.xlu0 %748
  %750 = vrot.lane.b32.xlu0 %v117, 96
  %v751 = vpop.permute.xlu0 %750
  %752 = vrot.lane.b32.xlu0 %v122, 96
  %v753 = vpop.permute.xlu0 %752
  %754 = vrot.lane.b32.xlu0 %v125, 96
  %v755 = vpop.permute.xlu0 %754
  %v760 = vadd.f32 %v744, %v749
  %v761 = vadd.f32 %v745, %v751
  %v762 = vadd.f32 %v746, %v753
  %v763 = vadd.f32 %v747, %v755
  %v764 = vtanh.pop %v760
  %v765 = vtanh.pop %v761
  %v766 = vtanh.pop %v762
  %v767 = vtanh.pop %v763
  %v768 = vxor.u32 %v760, 2147483648
  %v769 = vxor.u32 %v761, 2147483648
  %v770 = vxor.u32 %v762, 2147483648
  %v771 = vxor.u32 %v763, 2147483648
  %v772 = vmul.f32 %v768, 1.442695
  %v773 = vpow.pop %v772
  %v774 = vmul.f32 %v769, 1.442695
  %v775 = vpow.pop %v774
  %v776 = vmul.f32 %v770, 1.442695
  %v777 = vpow.pop %v776
  %v778 = vmul.f32 %v771, 1.442695
  %v779 = vpow.pop %v778
  %v780 = vadd.f32 %v773, 1.0
  %v781 = vadd.f32 %v775, 1.0
  %v782 = vadd.f32 %v777, 1.0
  %v783 = vadd.f32 %v779, 1.0
  %v784 = vrcp.pop %v780
  %v785 = vmul.f32 1.0, %v784
  %v786 = vrcp.pop %v781
  %v787 = vmul.f32 1.0, %v786
  %v788 = vrcp.pop %v782
  %v789 = vmul.f32 1.0, %v788
  %v790 = vrcp.pop %v783
  %v791 = vmul.f32 1.0, %v790
  %796 = vrot.lane.b32.xlu0 %v785, 120
  %v797 = vpop.permute.xlu0 %796
  %798 = vrot.lane.b32.xlu0 %v787, 120
  %v799 = vpop.permute.xlu0 %798
  %800 = vrot.lane.b32.xlu0 %v789, 120
  %v801 = vpop.permute.xlu0 %800
  %802 = vrot.lane.b32.xlu0 %v791, 120
  %v803 = vpop.permute.xlu0 %802
  %v808 = vmul.f32 %v764, %v797
  %v809 = vmul.f32 %v765, %v799
  %v810 = vmul.f32 %v766, %v801
  %v811 = vmul.f32 %v767, %v803
  %v812 = vpack.c.bf16 %v809, %v808
  %v813 = vpack.c.bf16 %v811, %v810
  %s814 = scalar_lea.vmem %s5, 8
  %v815 = vld [vmem:[%s814] sm:$0xf]
  %v817 = vsel %vm132, %v812, 0
  %v820 = vsel %vm132, %v813, 0
  %v823 = vsel %vm139, %v815, 0
  %825 = vmatprep.subr.bf16.mxu0 0
  %826 = vmatpush1.bf16.msra.mxu0 0
  %827 = vmatprep.subr.bf16.mxu0 0
  %828 = vmatpush1.bf16.msra.mxu0 0
  %829 = vmatprep.subr.bf16.mxu0 0
  %830 = vmatpush1.bf16.msra.mxu0 0
  %831 = vmatprep.subr.bf16.mxu0 0
  %832 = vmatpush1.bf16.msra.mxu0 0
  %833 = vmatprep.subr.bf16.mxu0 0
  %834 = vmatpush1.bf16.msra.mxu0 0
  %835 = vmatprep.subr.bf16.mxu0 0
  %836 = vmatpush1.bf16.msra.mxu0 0
  %837 = vmatprep.subr.bf16.mxu0 0
  %838 = vmatpush1.bf16.msra.mxu0 0
  %839 = vmatprep.subr.bf16.mxu0 0
  %840 = vmatpush1.bf16.msra.mxu0 %v823
  %841 = vmatprep.subr.bf16.mxu0 0
  %842 = vmatpush2.bf16.msra.mxu0 0
  %843 = vmatprep.subr.bf16.mxu0 0
  %844 = vmatpush2.bf16.msra.mxu0 0
  %845 = vmatprep.subr.bf16.mxu0 0
  %846 = vmatpush2.bf16.msra.mxu0 0
  %847 = vmatprep.subr.bf16.mxu0 0
  %848 = vmatpush2.bf16.msra.mxu0 0
  %849 = vmatprep.subr.bf16.mxu0 0
  %850 = vmatpush2.bf16.msra.mxu0 0
  %851 = vmatprep.subr.bf16.mxu0 0
  %852 = vmatpush2.bf16.msra.mxu0 0
  %853 = vmatprep.subr.bf16.mxu0 0
  %854 = vmatpush2.bf16.msra.mxu0 0
  %855 = vmatprep.subr.bf16.mxu0 0
  %856 = vmatpush2.bf16.msra.mxu0 0
  %857 = vmatprep.mubr.bf16.mxu0 0
  %858 = vmatmul.mubr.bf16.gmra.mxu0 %v817
  %v859 = vpop.f32.mrf.mxu0
  %v860 = vadd.f32 0.0, %v859
  %v861 = vpop.f32.mrf.mxu0
  %v862 = vpop.f32.mrf.mxu0
  %v863 = vadd.f32 0.0, %v862
  %v864 = vpop.f32.mrf.mxu0
  %865 = vmatprep.mubr.bf16.mxu0 0
  %866 = vmatmul.mubr.bf16.gmra.mxu0 %v820
  %v867 = vpop.f32.mrf.mxu0
  %v868 = vadd.f32 0.0, %v867
  %v869 = vpop.f32.mrf.mxu0
  %v870 = vpop.f32.mrf.mxu0
  %v871 = vadd.f32 0.0, %v870
  %v872 = vpop.f32.mrf.mxu0
  %873 = vdwg.mxu0
  %v874 = vadd.f32 %v641, %v860
  %v875 = vadd.f32 %v642, %v863
  %v876 = vadd.f32 %v643, %v868
  %v877 = vadd.f32 %v644, %v871
  %v878 = vadd.f32 %v645, %v860
  %v879 = vadd.f32 %v646, %v863
  %v880 = vadd.f32 %v647, %v868
  %v881 = vadd.f32 %v648, %v871
  %v882 = vpack.c.bf16 %v875, %v874
  %v883 = vpack.c.bf16 %v877, %v876
  %s884 = scalar_lea.vmem %s2, 12
  %v885 = vld [vmem:[%s884] sm:$0xf]
  %v887 = vsel %vm132, %v882, 0
  %v890 = vsel %vm132, %v883, 0
  %v893 = vsel %vm139, %v885, 0
  %895 = vmatprep.subr.bf16.mxu0 0
  %896 = vmatpush1.bf16.msra.mxu0 0
  %897 = vmatprep.subr.bf16.mxu0 0
  %898 = vmatpush1.bf16.msra.mxu0 0
  %899 = vmatprep.subr.bf16.mxu0 0
  %900 = vmatpush1.bf16.msra.mxu0 0
  %901 = vmatprep.subr.bf16.mxu0 0
  %902 = vmatpush1.bf16.msra.mxu0 0
  %903 = vmatprep.subr.bf16.mxu0 0
  %904 = vmatpush1.bf16.msra.mxu0 0
  %905 = vmatprep.subr.bf16.mxu0 0
  %906 = vmatpush1.bf16.msra.mxu0 0
  %907 = vmatprep.subr.bf16.mxu0 0
  %908 = vmatpush1.bf16.msra.mxu0 0
  %909 = vmatprep.subr.bf16.mxu0 0
  %910 = vmatpush1.bf16.msra.mxu0 %v893
  %911 = vmatprep.subr.bf16.mxu0 0
  %912 = vmatpush2.bf16.msra.mxu0 0
  %913 = vmatprep.subr.bf16.mxu0 0
  %914 = vmatpush2.bf16.msra.mxu0 0
  %915 = vmatprep.subr.bf16.mxu0 0
  %916 = vmatpush2.bf16.msra.mxu0 0
  %917 = vmatprep.subr.bf16.mxu0 0
  %918 = vmatpush2.bf16.msra.mxu0 0
  %919 = vmatprep.subr.bf16.mxu0 0
  %920 = vmatpush2.bf16.msra.mxu0 0
  %921 = vmatprep.subr.bf16.mxu0 0
  %922 = vmatpush2.bf16.msra.mxu0 0
  %923 = vmatprep.subr.bf16.mxu0 0
  %924 = vmatpush2.bf16.msra.mxu0 0
  %925 = vmatprep.subr.bf16.mxu0 0
  %926 = vmatpush2.bf16.msra.mxu0 0
  %927 = vmatprep.mubr.bf16.mxu0 0
  %928 = vmatmul.mubr.bf16.gmra.mxu0 %v887
  %v929 = vpop.f32.mrf.mxu0
  %v930 = vadd.f32 0.0, %v929
  %v931 = vpop.f32.mrf.mxu0
  %v932 = vpop.f32.mrf.mxu0
  %v933 = vadd.f32 0.0, %v932
  %v934 = vpop.f32.mrf.mxu0
  %935 = vmatprep.mubr.bf16.mxu0 0
  %936 = vmatmul.mubr.bf16.gmra.mxu0 %v890
  %v937 = vpop.f32.mrf.mxu0
  %v938 = vadd.f32 0.0, %v937
  %v939 = vpop.f32.mrf.mxu0
  %v940 = vpop.f32.mrf.mxu0
  %v941 = vadd.f32 0.0, %v940
  %v942 = vpop.f32.mrf.mxu0
  %943 = vdwg.mxu0
  %v945 = vrot.slane %v941, 7
  %v950 = vrot.slane %v930, 7
  %v951 = vrot.slane %v933, 7
  %v952 = vsel %vm259, %v950, %v951
  %v953 = vrot.slane %v938, 7
  %v954 = vsel %vm259, %v951, %v953
  %v955 = vsel %vm259, %v953, %v945
  %v960 = vsel %vm259, %v945, %v950
  %v961 = vmul.f32 %v960, %v34
  %v962 = vmul.f32 %v952, %v35
  %v963 = vmul.f32 %v954, %v36
  %v964 = vmul.f32 %v955, %v37
  %965 = vrot.lane.b32.xlu0 %v930, 112
  %v966 = vpop.permute.xlu0 %965
  %967 = vrot.lane.b32.xlu0 %v933, 112
  %v968 = vpop.permute.xlu0 %967
  %969 = vrot.lane.b32.xlu0 %v938, 112
  %v970 = vpop.permute.xlu0 %969
  %971 = vrot.lane.b32.xlu0 %v941, 112
  %v972 = vpop.permute.xlu0 %971
  %v977 = vadd.f32 %v961, %v966
  %v978 = vadd.f32 %v962, %v968
  %v979 = vadd.f32 %v963, %v970
  %v980 = vadd.f32 %v964, %v972
  %981 = vrot.lane.b32.xlu0 %v114, 80
  %v982 = vpop.permute.xlu0 %981
  %983 = vrot.lane.b32.xlu0 %v117, 80
  %v984 = vpop.permute.xlu0 %983
  %985 = vrot.lane.b32.xlu0 %v122, 80
  %v986 = vpop.permute.xlu0 %985
  %987 = vrot.lane.b32.xlu0 %v125, 80
  %v988 = vpop.permute.xlu0 %987
  %v993 = vadd.f32 %v977, %v982
  %v994 = vadd.f32 %v978, %v984
  %v995 = vadd.f32 %v979, %v986
  %v996 = vadd.f32 %v980, %v988
  %v997 = vtanh.pop %v993
  %v998 = vtanh.pop %v994
  %v999 = vtanh.pop %v995
  %v1000 = vtanh.pop %v996
  %v1001 = vxor.u32 %v993, 2147483648
  %v1002 = vxor.u32 %v994, 2147483648
  %v1003 = vxor.u32 %v995, 2147483648
  %v1004 = vxor.u32 %v996, 2147483648
  %v1005 = vmul.f32 %v1001, 1.442695
  %v1006 = vpow.pop %v1005
  %v1007 = vmul.f32 %v1002, 1.442695
  %v1008 = vpow.pop %v1007
  %v1009 = vmul.f32 %v1003, 1.442695
  %v1010 = vpow.pop %v1009
  %v1011 = vmul.f32 %v1004, 1.442695
  %v1012 = vpow.pop %v1011
  %v1013 = vadd.f32 %v1006, 1.0
  %v1014 = vadd.f32 %v1008, 1.0
  %v1015 = vadd.f32 %v1010, 1.0
  %v1016 = vadd.f32 %v1012, 1.0
  %v1017 = vrcp.pop %v1013
  %v1018 = vmul.f32 1.0, %v1017
  %v1019 = vrcp.pop %v1014
  %v1020 = vmul.f32 1.0, %v1019
  %v1021 = vrcp.pop %v1015
  %v1022 = vmul.f32 1.0, %v1021
  %v1023 = vrcp.pop %v1016
  %v1024 = vmul.f32 1.0, %v1023
  %1029 = vrot.lane.b32.xlu0 %v1018, 120
  %v1030 = vpop.permute.xlu0 %1029
  %1031 = vrot.lane.b32.xlu0 %v1020, 120
  %v1032 = vpop.permute.xlu0 %1031
  %1033 = vrot.lane.b32.xlu0 %v1022, 120
  %v1034 = vpop.permute.xlu0 %1033
  %1035 = vrot.lane.b32.xlu0 %v1024, 120
  %v1036 = vpop.permute.xlu0 %1035
  %v1041 = vmul.f32 %v997, %v1030
  %v1042 = vmul.f32 %v998, %v1032
  %v1043 = vmul.f32 %v999, %v1034
  %v1044 = vmul.f32 %v1000, %v1036
  %v1045 = vpack.c.bf16 %v1042, %v1041
  %v1046 = vpack.c.bf16 %v1044, %v1043
  %s1047 = scalar_lea.vmem %s5, 12
  %v1048 = vld [vmem:[%s1047] sm:$0xf]
  %v1050 = vsel %vm132, %v1045, 0
  %v1053 = vsel %vm132, %v1046, 0
  %v1056 = vsel %vm139, %v1048, 0
  %1058 = vmatprep.subr.bf16.mxu0 0
  %1059 = vmatpush1.bf16.msra.mxu0 0
  %1060 = vmatprep.subr.bf16.mxu0 0
  %1061 = vmatpush1.bf16.msra.mxu0 0
  %1062 = vmatprep.subr.bf16.mxu0 0
  %1063 = vmatpush1.bf16.msra.mxu0 0
  %1064 = vmatprep.subr.bf16.mxu0 0
  %1065 = vmatpush1.bf16.msra.mxu0 0
  %1066 = vmatprep.subr.bf16.mxu0 0
  %1067 = vmatpush1.bf16.msra.mxu0 0
  %1068 = vmatprep.subr.bf16.mxu0 0
  %1069 = vmatpush1.bf16.msra.mxu0 0
  %1070 = vmatprep.subr.bf16.mxu0 0
  %1071 = vmatpush1.bf16.msra.mxu0 0
  %1072 = vmatprep.subr.bf16.mxu0 0
  %1073 = vmatpush1.bf16.msra.mxu0 %v1056
  %1074 = vmatprep.subr.bf16.mxu0 0
  %1075 = vmatpush2.bf16.msra.mxu0 0
  %1076 = vmatprep.subr.bf16.mxu0 0
  %1077 = vmatpush2.bf16.msra.mxu0 0
  %1078 = vmatprep.subr.bf16.mxu0 0
  %1079 = vmatpush2.bf16.msra.mxu0 0
  %1080 = vmatprep.subr.bf16.mxu0 0
  %1081 = vmatpush2.bf16.msra.mxu0 0
  %1082 = vmatprep.subr.bf16.mxu0 0
  %1083 = vmatpush2.bf16.msra.mxu0 0
  %1084 = vmatprep.subr.bf16.mxu0 0
  %1085 = vmatpush2.bf16.msra.mxu0 0
  %1086 = vmatprep.subr.bf16.mxu0 0
  %1087 = vmatpush2.bf16.msra.mxu0 0
  %1088 = vmatprep.subr.bf16.mxu0 0
  %1089 = vmatpush2.bf16.msra.mxu0 0
  %1090 = vmatprep.mubr.bf16.mxu0 0
  %1091 = vmatmul.mubr.bf16.gmra.mxu0 %v1050
  %v1092 = vpop.f32.mrf.mxu0
  %v1093 = vadd.f32 0.0, %v1092
  %v1094 = vpop.f32.mrf.mxu0
  %v1095 = vpop.f32.mrf.mxu0
  %v1096 = vadd.f32 0.0, %v1095
  %v1097 = vpop.f32.mrf.mxu0
  %1098 = vmatprep.mubr.bf16.mxu0 0
  %1099 = vmatmul.mubr.bf16.gmra.mxu0 %v1053
  %v1100 = vpop.f32.mrf.mxu0
  %v1101 = vadd.f32 0.0, %v1100
  %v1102 = vpop.f32.mrf.mxu0
  %v1103 = vpop.f32.mrf.mxu0
  %v1104 = vadd.f32 0.0, %v1103
  %v1105 = vpop.f32.mrf.mxu0
  %1106 = vdwg.mxu0
  %v1107 = vadd.f32 %v878, %v1093
  %v1108 = vadd.f32 %v879, %v1096
  %v1109 = vadd.f32 %v880, %v1101
  %v1110 = vadd.f32 %v881, %v1104
  %v1111 = vmax.f32 %v1107, 0.0
  %v1112 = vmax.f32 %v1108, 0.0
  %v1113 = vmax.f32 %v1109, 0.0
  %v1114 = vmax.f32 %v1110, 0.0
  %v1115 = vpack.c.bf16 %v1112, %v1111
  %v1116 = vpack.c.bf16 %v1114, %v1113
  %v1117 = vlaneseq
  %v1118 = vshrl.u32 %v1117, 7
  %v1119 = vsub.s32 1, %v1118
  %v1120 = vrot.slane %v42, %v1119
  %1123 = vrot.lane.b32.xlu0 %v1115, 120
  %v1124 = vpop.permute.xlu0 %1123
  %1125 = vrot.lane.b32.xlu0 %v1116, 120
  %v1126 = vpop.permute.xlu0 %1125
  %v1128 = vsel %vm132, %v1124, 0
  %v1131 = vsel %vm132, %v1126, 0
  %v1134 = vsel %vm139, %v39, 0
  %1136 = vmatprep.subr.bf16.mxu0 0
  %1137 = vmatpush1.bf16.msra.mxu0 0
  %1138 = vmatprep.subr.bf16.mxu0 0
  %1139 = vmatpush1.bf16.msra.mxu0 0
  %1140 = vmatprep.subr.bf16.mxu0 0
  %1141 = vmatpush1.bf16.msra.mxu0 0
  %1142 = vmatprep.subr.bf16.mxu0 0
  %1143 = vmatpush1.bf16.msra.mxu0 0
  %1144 = vmatprep.subr.bf16.mxu0 0
  %1145 = vmatpush1.bf16.msra.mxu0 0
  %1146 = vmatprep.subr.bf16.mxu0 0
  %1147 = vmatpush1.bf16.msra.mxu0 0
  %1148 = vmatprep.subr.bf16.mxu0 0
  %1149 = vmatpush1.bf16.msra.mxu0 0
  %1150 = vmatprep.subr.bf16.mxu0 0
  %1151 = vmatpush1.bf16.msra.mxu0 %v1134
  %1152 = vmatprep.subr.bf16.mxu0 0
  %1153 = vmatpush2.bf16.msra.mxu0 0
  %1154 = vmatprep.subr.bf16.mxu0 0
  %1155 = vmatpush2.bf16.msra.mxu0 0
  %1156 = vmatprep.subr.bf16.mxu0 0
  %1157 = vmatpush2.bf16.msra.mxu0 0
  %1158 = vmatprep.subr.bf16.mxu0 0
  %1159 = vmatpush2.bf16.msra.mxu0 0
  %1160 = vmatprep.subr.bf16.mxu0 0
  %1161 = vmatpush2.bf16.msra.mxu0 0
  %1162 = vmatprep.subr.bf16.mxu0 0
  %1163 = vmatpush2.bf16.msra.mxu0 0
  %1164 = vmatprep.subr.bf16.mxu0 0
  %1165 = vmatpush2.bf16.msra.mxu0 0
  %1166 = vmatprep.subr.bf16.mxu0 0
  %1167 = vmatpush2.bf16.msra.mxu0 0
  %1168 = vmatprep.mubr.bf16.mxu0 0
  %1169 = vmatmul.mubr.bf16.gmra.mxu0 %v1128
  %v1170 = vpop.f32.mrf.mxu0
  %v1171 = vadd.f32 %v1120, %v1170
  %v1172 = vpop.f32.mrf.mxu0
  %v1173 = vpop.f32.mrf.mxu0
  %v1174 = vadd.f32 %v1120, %v1173
  %v1175 = vpop.f32.mrf.mxu0
  %1176 = vmatprep.mubr.bf16.mxu0 0
  %1177 = vmatmul.mubr.bf16.gmra.mxu0 %v1131
  %v1178 = vpop.f32.mrf.mxu0
  %v1179 = vadd.f32 %v1120, %v1178
  %v1180 = vpop.f32.mrf.mxu0
  %v1181 = vpop.f32.mrf.mxu0
  %v1182 = vadd.f32 %v1120, %v1181
  %v1183 = vpop.f32.mrf.mxu0
  %1184 = vdwg.mxu0
  %v1185 = vmax.f32 %v1171, 0.0
  %v1186 = vmax.f32 %v1174, 0.0
  %v1187 = vmax.f32 %v1179, 0.0
  %v1188 = vmax.f32 %v1182, 0.0
  %v1189 = vpack.c.bf16 %v1186, %v1185
  %v1190 = vpack.c.bf16 %v1188, %v1187
  %v1191 = vlaneseq
  %v1192 = vshrl.u32 %v1191, 7
  %v1193 = vsub.s32 2, %v1192
  %v1194 = vrot.slane %v42, %v1193
  %v1197 = vunpack.c.l.b16 %v40
  %v1198 = vunpack.c.l.b16 %v41
  %v1199 = vpack.c.b16 %v1198, %v1197
  %v1202 = vsel %vm72, %v1189, 0
  %v1205 = vsel %vm72, %v1190, 0
  %1207 = vmatprep.subr.bf16.mxu0 0
  %1208 = vmatpush1.bf16.msra.mxu0 0
  %1209 = vmatprep.subr.bf16.mxu0 0
  %1210 = vmatpush1.bf16.msra.mxu0 0
  %1211 = vmatprep.subr.bf16.mxu0 0
  %1212 = vmatpush1.bf16.msra.mxu0 0
  %1213 = vmatprep.subr.bf16.mxu0 0
  %1214 = vmatpush1.bf16.msra.mxu0 0
  %1215 = vmatprep.subr.bf16.mxu0 0
  %1216 = vmatpush1.bf16.msra.mxu0 0
  %1217 = vmatprep.subr.bf16.mxu0 0
  %1218 = vmatpush1.bf16.msra.mxu0 0
  %1219 = vmatprep.subr.bf16.mxu0 0
  %1220 = vmatpush1.bf16.msra.mxu0 0
  %1221 = vmatprep.subr.bf16.mxu0 0
  %1222 = vmatpush1.bf16.msra.mxu0 %v1199
  %1223 = vmatprep.subr.bf16.mxu0 0
  %1224 = vmatpush2.bf16.msra.mxu0 0
  %1225 = vmatprep.subr.bf16.mxu0 0
  %1226 = vmatpush2.bf16.msra.mxu0 0
  %1227 = vmatprep.subr.bf16.mxu0 0
  %1228 = vmatpush2.bf16.msra.mxu0 0
  %1229 = vmatprep.subr.bf16.mxu0 0
  %1230 = vmatpush2.bf16.msra.mxu0 0
  %1231 = vmatprep.subr.bf16.mxu0 0
  %1232 = vmatpush2.bf16.msra.mxu0 0
  %1233 = vmatprep.subr.bf16.mxu0 0
  %1234 = vmatpush2.bf16.msra.mxu0 0
  %1235 = vmatprep.subr.bf16.mxu0 0
  %1236 = vmatpush2.bf16.msra.mxu0 0
  %1237 = vmatprep.subr.bf16.mxu0 0
  %1238 = vmatpush2.bf16.msra.mxu0 0
  %1239 = vmatprep.mubr.bf16.mxu0 0
  %1240 = vmatmul.mubr.bf16.gmra.mxu0 %v1202
  %v1241 = vpop.f32.mrf.mxu0
  %v1242 = vadd.f32 %v1194, %v1241
  %v1243 = vpop.f32.mrf.mxu0
  %v1244 = vpop.f32.mrf.mxu0
  %v1245 = vadd.f32 %v1194, %v1244
  %v1246 = vpop.f32.mrf.mxu0
  %1247 = vmatprep.mubr.bf16.mxu0 0
  %1248 = vmatmul.mubr.bf16.gmra.mxu0 %v1205
  %v1249 = vpop.f32.mrf.mxu0
  %v1250 = vadd.f32 %v1194, %v1249
  %v1251 = vpop.f32.mrf.mxu0
  %v1252 = vpop.f32.mrf.mxu0
  %v1253 = vadd.f32 %v1194, %v1252
  %v1254 = vpop.f32.mrf.mxu0
  %1255 = vdwg.mxu0
  %v1256 = vsel %vm72, %v1242, -inf
  %v1257 = vsel %vm72, %v1245, -inf
  %v1258 = vmax.f32 %v1256, %v1257
  %v1259 = vrot.slane %v1258, 4
  %v1260 = vmax.f32 %v1258, %v1259
  %v1261 = vrot.slane %v1260, 2
  %v1262 = vmax.f32 %v1260, %v1261
  %v1263 = vrot.slane %v1262, 1
  %v1264 = vmax.f32 %v1262, %v1263
  %v1266 = vrot.slane %v42, 1
  %v1268 = vmax.f32 %v42, %v1266
  %v1269 = vmax.f32 %v1264, %v1268
  %v1270 = vlaneseq
  %v1271 = vshrl.u32 %v1270, 7
  %v1272 = vsub.s32 2, %v1271
  %v1273 = vrot.slane %v1269, %v1272
  %v1274 = vsub.f32 %v1242, %v1273
  %v1275 = vsub.f32 %v1245, %v1273
  %v1276 = vmul.f32 %v1274, 1.442695
  %v1277 = vpow.pop %v1276
  %v1278 = vmul.f32 %v1275, 1.442695
  %v1279 = vpow.pop %v1278
  %v1280 = vsel %vm72, %v1277, 0.0
  %v1281 = vsel %vm72, %v1279, 0.0
  %v1282 = vadd.f32 %v1280, %v1281
  %v1283 = vrot.slane %v1282, 4
  %v1284 = vadd.f32 %v1282, %v1283
  %v1285 = vrot.slane %v1284, 2
  %v1286 = vadd.f32 %v1284, %v1285
  %v1287 = vrot.slane %v1286, 1
  %v1288 = vadd.f32 %v1286, %v1287
  %v1289 = vsub.f32 %v42, %v1269
  %v1290 = vmul.f32 %v1289, 1.442695
  %v1291 = vpow.pop %v1290
  %v1292 = vmul.f32 %v1291, 2.0
  %v1293 = vadd.f32 %v1288, %v1292
  %v1295 = vrot.slane %v1269, 7
  %v1297 = vsub.f32 %v42, %v1295
  %v1298 = vmul.f32 %v1297, 1.442695
  %v1299 = vpow.pop %v1298
  %v1300 = vmul.f32 %v1299, 2.0
  %v1302 = vrot.slane %v1300, 1
  %v1304 = vadd.f32 %v1293, %v1302
  %v1305 = vlog2.pop %v1304
  %v1306 = vmul.f32 %v1305, 0.6931472
  %v1307 = vadd.f32 %v1306, %v1269
  %v1308 = vsub.f32 %v42, %v1307
  %vm1309 = vcmask 124930
  %1310 = vst.msk [vmem:[%s8 - $0x2] sm:$0x4] %vm1309, %v1308
  %v1312 = vrot.slane %v1307, 7
  %v1314 = vsub.f32 %v42, %v1312
  %vm1315 = vcmask 125955
  %1316 = vst.msk [vmem:[%s8 - $0x2] sm:$0x8] %vm1315, %v1314
  %v1317 = vlaneseq
  %v1318 = vshrl.u32 %v1317, 7
  %v1319 = vsub.s32 2, %v1318
  %v1320 = vrot.slane %v1307, %v1319
  %v1321 = vsub.f32 %v1242, %v1320
  %v1322 = vsub.f32 %v1245, %v1320
  %1323 = vst.msk [vmem:[%s8 + $0x2] sm:$0xff] %vm72, %v1321
  %1324 = vst.msk [vmem:[%s8 + $0xa] sm:$0xff] %vm72, %v1322
  %1325 = vst.msk [vmem:[%s8 + $0xf] sm:$0x8] %vm1315, %v1314
  %1326 = vst.msk [vmem:[%s8 + $0x11] sm:$0x4] %vm1309, %v1308
  %v1327 = vsel %vm72, %v1250, -inf
  %v1328 = vsel %vm72, %v1253, -inf
  %v1329 = vmax.f32 %v1327, %v1328
  %v1330 = vrot.slane %v1329, 4
  %v1331 = vmax.f32 %v1329, %v1330
  %v1332 = vrot.slane %v1331, 2
  %v1333 = vmax.f32 %v1331, %v1332
  %v1334 = vrot.slane %v1333, 1
  %v1335 = vmax.f32 %v1333, %v1334
  %v1336 = vmax.f32 %v1335, %v1268
  %v1337 = vlaneseq
  %v1338 = vshrl.u32 %v1337, 7
  %v1339 = vsub.s32 2, %v1338
  %v1340 = vrot.slane %v1336, %v1339
  %v1341 = vsub.f32 %v1250, %v1340
  %v1342 = vsub.f32 %v1253, %v1340
  %v1343 = vmul.f32 %v1341, 1.442695
  %v1344 = vpow.pop %v1343
  %v1345 = vmul.f32 %v1342, 1.442695
  %v1346 = vpow.pop %v1345
  %v1347 = vsel %vm72, %v1344, 0.0
  %v1348 = vsel %vm72, %v1346, 0.0
  %v1349 = vadd.f32 %v1347, %v1348
  %v1350 = vrot.slane %v1349, 4
  %v1351 = vadd.f32 %v1349, %v1350
  %v1352 = vrot.slane %v1351, 2
  %v1353 = vadd.f32 %v1351, %v1352
  %v1354 = vrot.slane %v1353, 1
  %v1355 = vadd.f32 %v1353, %v1354
  %v1356 = vsub.f32 %v42, %v1336
  %v1357 = vmul.f32 %v1356, 1.442695
  %v1358 = vpow.pop %v1357
  %v1359 = vmul.f32 %v1358, 2.0
  %v1360 = vadd.f32 %v1355, %v1359
  %v1362 = vrot.slane %v1336, 7
  %v1364 = vsub.f32 %v42, %v1362
  %v1365 = vmul.f32 %v1364, 1.442695
  %v1366 = vpow.pop %v1365
  %v1367 = vmul.f32 %v1366, 2.0
  %v1369 = vrot.slane %v1367, 1
  %v1371 = vadd.f32 %v1360, %v1369
  %v1372 = vlog2.pop %v1371
  %v1373 = vmul.f32 %v1372, 0.6931472
  %v1374 = vadd.f32 %v1373, %v1336
  %v1375 = vsub.f32 %v42, %v1374
  %s1376 = scalar_lea.vmem %s8, 24
  %1377 = vst.msk [vmem:[%s1376 - $0x2] sm:$0x4] %vm1309, %v1375
  %v1379 = vrot.slane %v1374, 7
  %v1381 = vsub.f32 %v42, %v1379
  %1382 = vst.msk [vmem:[%s1376 - $0x2] sm:$0x8] %vm1315, %v1381
  %v1383 = vlaneseq
  %v1384 = vshrl.u32 %v1383, 7
  %v1385 = vsub.s32 2, %v1384
  %v1386 = vrot.slane %v1374, %v1385
  %v1387 = vsub.f32 %v1250, %v1386
  %v1388 = vsub.f32 %v1253, %v1386
  %1389 = vst.msk [vmem:[%s1376 + $0x2] sm:$0xff] %vm72, %v1387
  %1390 = vst.msk [vmem:[%s1376 + $0xa] sm:$0xff] %vm72, %v1388
  %1391 = vst.msk [vmem:[%s1376 + $0xf] sm:$0x8] %vm1315, %v1381
  %1392 = vst.msk [vmem:[%s1376 + $0x11] sm:$0x4] %vm1309, %v1375
  // Predicated region
  $region34: #{wavenet_forward.1} parent=0 // pred_check
    _
  $region35: #{wavenet_forward.1} parent=0 // pred_check_branch
    %1394 = sbr.rel (0) target = $region37
  $region36: #{wavenet_forward.1} parent=0 // pred_region
    _
  $region37: #{wavenet_forward.1} parent=0 // pred_fallthru
    _
  // Predicated region
  $region38: #{wavenet_forward.1} parent=0 // pred_check
    _
  $region39: #{wavenet_forward.1} parent=0 // pred_check_branch
    %1396 = sbr.rel (0) target = $region41
  $region40: #{wavenet_forward.1} parent=0 // pred_region
    _
  $region41: #{wavenet_forward.1} parent=0 // pred_fallthru
    _

</llo_original>
